<compile_context>
chip_gen: v7x
topology: tpu7x:2x2x1
jax: 0.10.0
libtpu: 0.0.40
codegen_flags: <defaults>
</compile_context>

<pallas_src>
import functools

import jax
import jax.numpy as jnp
from jax.experimental import pallas as pl
from jax.experimental.pallas import tpu as pltpu

BN_EPS = 1e-5


# ----------------------------------------------------------------------------
# Fused dense-block kernel
# ----------------------------------------------------------------------------
def _dense_block_kernel(x_ref, bn_ref, w_ref, o_ref, *, num_layers, growth):
    # x_ref:  (1, H, W, C0)            f32   input features (one image)
    # bn_ref: (1, 2, C_total)          f32   [scale; shift], zero-padded > Cin
    # w_ref:  (1, C_total, 9*G)        bf16  conv weights, tap-major columns,
    #                                        zero-padded on channels >= Cin
    # o_ref:  (1, H, W, C_total)       f32   running concat buffer == output
    l = pl.program_id(1)
    _, H, W, C0 = x_ref.shape
    C_total = o_ref.shape[3]
    G = growth
    HW = H * W

    # Layer 0: initialize the resident concat buffer for this image:
    # input features in the first C0 channels, zeros elsewhere.
    @pl.when(l == 0)
    def _init():
        o_ref[0, :, :, :C0] = x_ref[0]
        o_ref[0, :, :, C0:C_total] = jnp.zeros(
            (H, W, C_total - C0), jnp.float32)

    # BN(eval) + ReLU on the full-width feature map (padded channels are 0).
    feat = o_ref[0].reshape(HW, C_total)                 # (HW, C_total) f32
    bn = bn_ref[0]                                       # (2, C_total)
    a = jnp.maximum(feat * bn[0:1, :] + bn[1:2, :], 0.0)
    a_bf = a.astype(jnp.bfloat16)

    # All 9 conv taps in ONE lane-dense MXU matmul: (HW, C) x (C, 9G).
    p = jnp.dot(a_bf, w_ref[0], preferred_element_type=jnp.float32)

    # Shift the NARROW per-tap partial products spatially (zero pad once,
    # then 9 static slices); sum into the (H, W, G) accumulator.
    pp = jnp.pad(p.reshape(H, W, 9 * G), ((1, 1), (1, 1), (0, 0)))
    acc = jnp.zeros((H, W, G), jnp.float32)
    for tap in range(9):                                 # unrolled
        ky, kx = tap // 3, tap % 3
        acc = acc + pp[ky:ky + H, kx:kx + W, tap * G:(tap + 1) * G]

    # Write this layer's G new channels into the concat buffer (static slice
    # per layer, selected by pl.when, to keep all lane offsets static).
    for i in range(num_layers):
        @pl.when(l == i)
        def _store(i=i):
            o_ref[0, :, :, C0 + i * G: C0 + (i + 1) * G] = acc


def _dense_block_pallas(x_nhwc, bn_packed, w_packed, num_layers, growth):
    N, H, W, C0 = x_nhwc.shape
    c_total = C0 + num_layers * growth
    assert bn_packed.shape == (num_layers, 2, c_total)
    assert w_packed.shape == (num_layers, c_total, 9 * growth)

    kernel = functools.partial(
        _dense_block_kernel, num_layers=num_layers, growth=growth)

    # Rough VMEM budget (double-buffered blocks + in-kernel temporaries).
    tile_bytes = (H * W * C0 * 4 + 2 * c_total * 4
                  + c_total * 9 * growth * 2 + H * W * c_total * 4)
    temp_bytes = (H * W * c_total * 6
                  + (H + 2) * (W + 2) * 9 * growth * 8
                  + H * W * growth * 4)
    vmem_limit = int(min(max(2 * tile_bytes + temp_bytes + (2 << 20), 16 << 20),
                         48 << 20))

    return pl.pallas_call(
        kernel,
        out_shape=jax.ShapeDtypeStruct((N, H, W, c_total), jnp.float32),
        grid=(N, num_layers),
        in_specs=[
            pl.BlockSpec((1, H, W, C0), lambda n, l: (n, 0, 0, 0)),
            pl.BlockSpec((1, 2, c_total), lambda n, l: (l, 0, 0)),
            pl.BlockSpec((1, c_total, 9 * growth), lambda n, l: (l, 0, 0)),
        ],
        out_specs=pl.BlockSpec((1, H, W, c_total), lambda n, l: (n, 0, 0, 0)),
        compiler_params=pltpu.CompilerParams(
            dimension_semantics=("parallel", "arbitrary"),
            vmem_limit_bytes=vmem_limit),
    )(x_nhwc, bn_packed, w_packed)


# ----------------------------------------------------------------------------
# Parameter construction (deterministic, synthetic) + packing for the kernel
# ----------------------------------------------------------------------------
def make_dense_block_params(key, num_layers, num_input_features, growth_rate):
    params = []
    for i in range(num_layers):
        cin = num_input_features + i * growth_rate
        key, kw, kg, kb, km, kv = jax.random.split(key, 6)
        fan_in = cin * 9
        w_oihw = jax.random.normal(kw, (growth_rate, cin, 3, 3),
                                   jnp.float32) * (2.0 / fan_in) ** 0.5
        # OIHW -> (ky,kx,Cin,G) -> (9, Cin, G), tap = ky*3 + kx
        w = jnp.transpose(w_oihw, (2, 3, 1, 0)).reshape(9, cin, growth_rate)
        gamma = jax.random.uniform(kg, (cin,), jnp.float32, 0.5, 1.5)
        beta = jax.random.normal(kb, (cin,), jnp.float32) * 0.1
        mean = jax.random.normal(km, (cin,), jnp.float32) * 0.1
        var = jax.random.uniform(kv, (cin,), jnp.float32, 0.5, 1.5)
        scale = (gamma / jnp.sqrt(var + BN_EPS)).reshape(1, cin)
        shift = (beta - mean * gamma / jnp.sqrt(var + BN_EPS)).reshape(1, cin)
        params.append((scale, shift, w))
    return params


def pack_block_params(params, c0, growth):
    """Stack per-layer params, zero-padded to C_total channels.

    Returns bn_packed (L,2,C_total) f32 and w_packed (L,C_total,9G) bf16 with
    tap-major column groups (columns [t*G:(t+1)*G] = tap t = ky*3+kx).
    """
    num_layers = len(params)
    c_total = c0 + num_layers * growth
    bn_rows, w_rows = [], []
    for i, (scale, shift, w) in enumerate(params):
        cin = c0 + i * growth
        pad = c_total - cin
        s = jnp.pad(scale.reshape(-1), (0, pad))
        b = jnp.pad(shift.reshape(-1), (0, pad))
        bn_rows.append(jnp.stack([s, b], axis=0))                # (2, C_total)
        w_cols = jnp.transpose(w, (1, 0, 2)).reshape(cin, 9 * growth)
        w_rows.append(jnp.pad(w_cols, ((0, pad), (0, 0))))
    bn_packed = jnp.stack(bn_rows, axis=0).astype(jnp.float32)
    w_packed = jnp.stack(w_rows, axis=0).astype(jnp.bfloat16)
    return bn_packed, w_packed


# ----------------------------------------------------------------------------
# _DenseBlock forward (NCHW in / NCHW out, matching PyTorch)
# ----------------------------------------------------------------------------
@functools.partial(jax.jit, static_argnums=(3, 4))
def dense_block_forward(x_nchw, bn_packed, w_packed, num_layers, growth):
    x_nhwc = jnp.transpose(x_nchw, (0, 2, 3, 1))            # NCHW -> NHWC
    out_nhwc = _dense_block_pallas(x_nhwc, bn_packed, w_packed,
                                   num_layers, growth)
    return jnp.transpose(out_nhwc, (0, 3, 1, 2))             # NHWC -> NCHW


# ----------------------------------------------------------------------------
# Pure-JAX reference (bf16-quantized operands, f32 accumulation like the MXU)
# ----------------------------------------------------------------------------
def dense_block_reference(x_nchw, params):
    feats = [jnp.transpose(x_nchw, (0, 2, 3, 1))]
    for (scale, shift, w) in params:
        cat = jnp.concatenate(feats, axis=-1)
        cin = cat.shape[-1]
        g = w.shape[-1]
        a = jnp.maximum(cat * scale[0] + shift[0], 0.0)
        a = a.astype(jnp.bfloat16).astype(jnp.float32)
        w_q = w.astype(jnp.bfloat16).astype(jnp.float32)
        w_hwio = w_q.reshape(3, 3, cin, g)
        y = jax.lax.conv_general_dilated(
            a, w_hwio, window_strides=(1, 1), padding="SAME",
            dimension_numbers=("NHWC", "HWIO", "NHWC"),
            precision=jax.lax.Precision.HIGHEST)
        feats.append(y)
    out = jnp.concatenate(feats, axis=-1)
    return jnp.transpose(out, (0, 3, 1, 2))


if __name__ == "__main__":
    # Small but lane-friendly shapes: batch=2, num_input_features=32,
    # growth_rate=32, num_layers=3, spatial=16x16 -> C_total = 32 + 3*32 = 128.
    N, C0, H, W = 2, 32, 16, 16
    GROWTH, NUM_LAYERS = 32, 3

    key = jax.random.PRNGKey(0)
    kx, kp = jax.random.split(key)
    x = jax.random.normal(kx, (N, C0, H, W), jnp.float32)    # NCHW like PyTorch
    params = make_dense_block_params(kp, NUM_LAYERS, C0, GROWTH)
    bn_packed, w_packed = pack_block_params(params, C0, GROWTH)

    out = dense_block_forward(x, bn_packed, w_packed, NUM_LAYERS, GROWTH)
    out = jax.block_until_ready(out)
    assert out.shape == (N, C0 + NUM_LAYERS * GROWTH, H, W), out.shape

    ref = jax.block_until_ready(dense_block_reference(x, params))
    err = float(jnp.max(jnp.abs(out - ref)))
    assert err < 5e-3, f"mismatch vs reference: {err}"

    print("KERNEL_OK")
</pallas_src>

<mosaic_0001>
module attributes {stable_mosaic.version = 11 : i64} {
  func.func @_dense_block_kernel(%arg0: i32, %arg1: i32, %arg2: memref<1x16x16x32xf32, #tpu.memory_space<vmem>>, %arg3: memref<1x2x128xf32, #tpu.memory_space<vmem>>, %arg4: memref<1x128x288xbf16, #tpu.memory_space<vmem>>, %arg5: memref<1x16x16x128xf32, #tpu.memory_space<vmem>>) attributes {dimension_semantics = [#tpu.dimension_semantics<parallel>, #tpu.dimension_semantics<arbitrary>], iteration_bounds = array<i64: 2, 3>, scalar_prefetch = 0 : i64, scratch_operands = 0 : i64, tpu.core_type = #tpu.core_type<tc>, window_params = [{transform_indices = @transform_0, window_bounds = array<i64: 1, 16, 16, 32>}, {transform_indices = @transform_1, window_bounds = array<i64: 1, 2, 128>}, {transform_indices = @transform_2, window_bounds = array<i64: 1, 128, 288>}, {transform_indices = @transform_3, window_bounds = array<i64: 1, 16, 16, 128>}]} {
    %c0_i32 = arith.constant 0 : i32
    %0 = arith.cmpi eq, %arg1, %c0_i32 : i32
    %1 = arith.extui %0 : i1 to i32
    %c0_i32_0 = arith.constant 0 : i32
    %2 = arith.cmpi ne, %1, %c0_i32_0 : i32
    scf.if %2 {
      %c0_17 = arith.constant 0 : index
      %c0_18 = arith.constant 0 : index
      %c0_19 = arith.constant 0 : index
      %c0_20 = arith.constant 0 : index
      %58 = vector.load %arg2[%c0_17, %c0_18, %c0_19, %c0_20] : memref<1x16x16x32xf32, #tpu.memory_space<vmem>>, vector<1x16x16x32xf32>
      %59 = vector.shape_cast %58 : vector<1x16x16x32xf32> to vector<16x16x32xf32>
      %c0_21 = arith.constant 0 : index
      %c0_22 = arith.constant 0 : index
      %c0_23 = arith.constant 0 : index
      %c0_24 = arith.constant 0 : index
      %60 = vector.load %arg5[%c0_21, %c0_22, %c0_23, %c0_24] : memref<1x16x16x128xf32, #tpu.memory_space<vmem>>, vector<1x16x16x32xf32>
      %61 = vector.shape_cast %60 : vector<1x16x16x32xf32> to vector<16x16x32xf32>
      %62 = vector.shape_cast %59 : vector<16x16x32xf32> to vector<1x16x16x32xf32>
      tpu.vector_store %arg5[%c0_21, %c0_22, %c0_23, %c0_24], %62 {strides = array<i32>} : memref<1x16x16x128xf32, #tpu.memory_space<vmem>>, vector<1x16x16x32xf32>,
      %cst_25 = arith.constant 0.000000e+00 : f32
      %63 = vector.broadcast %cst_25 : f32 to vector<16x16x96xf32>
      %c0_26 = arith.constant 0 : index
      %c0_27 = arith.constant 0 : index
      %c0_28 = arith.constant 0 : index
      %c32 = arith.constant 32 : index
      %64 = vector.load %arg5[%c0_26, %c0_27, %c0_28, %c32] : memref<1x16x16x128xf32, #tpu.memory_space<vmem>>, vector<1x16x16x96xf32>
      %65 = vector.shape_cast %64 : vector<1x16x16x96xf32> to vector<16x16x96xf32>
      %66 = vector.shape_cast %63 : vector<16x16x96xf32> to vector<1x16x16x96xf32>
      tpu.vector_store %arg5[%c0_26, %c0_27, %c0_28, %c32], %66 {strides = array<i32>} : memref<1x16x16x128xf32, #tpu.memory_space<vmem>>, vector<1x16x16x96xf32>,
    } else {
    }
    %c0 = arith.constant 0 : index
    %c0_1 = arith.constant 0 : index
    %c0_2 = arith.constant 0 : index
    %c0_3 = arith.constant 0 : index
    %3 = vector.load %arg5[%c0, %c0_1, %c0_2, %c0_3] : memref<1x16x16x128xf32, #tpu.memory_space<vmem>>, vector<1x16x16x128xf32>
    %4 = vector.shape_cast %3 : vector<1x16x16x128xf32> to vector<16x16x128xf32>
    %5 = vector.shape_cast %4 : vector<16x16x128xf32> to vector<256x128xf32>
    %c0_4 = arith.constant 0 : index
    %c0_5 = arith.constant 0 : index
    %c0_6 = arith.constant 0 : index
    %6 = vector.load %arg3[%c0_4, %c0_5, %c0_6] : memref<1x2x128xf32, #tpu.memory_space<vmem>>, vector<1x2x128xf32>
    %7 = vector.shape_cast %6 : vector<1x2x128xf32> to vector<2x128xf32>
    %8 = vector.extract_strided_slice %7 {offsets = [0, 0], sizes = [1, 128], strides = [1, 1]} : vector<2x128xf32> to vector<1x128xf32>
    %9 = vector.broadcast %8 : vector<1x128xf32> to vector<256x128xf32>
    %10 = arith.mulf %5, %9 : vector<256x128xf32>
    %11 = vector.extract_strided_slice %7 {offsets = [1, 0], sizes = [1, 128], strides = [1, 1]} : vector<2x128xf32> to vector<1x128xf32>
    %12 = vector.broadcast %11 : vector<1x128xf32> to vector<256x128xf32>
    %13 = arith.addf %10, %12 : vector<256x128xf32>
    %cst = arith.constant 0.000000e+00 : f32
    %14 = vector.broadcast %cst : f32 to vector<256x128xf32>
    %15 = arith.maximumf %13, %14 : vector<256x128xf32>
    %16 = arith.truncf %15 : vector<256x128xf32> to vector<256x128xbf16>
    %c0_7 = arith.constant 0 : index
    %c0_8 = arith.constant 0 : index
    %c0_9 = arith.constant 0 : index
    %17 = vector.load %arg4[%c0_7, %c0_8, %c0_9] : memref<1x128x288xbf16, #tpu.memory_space<vmem>>, vector<1x128x288xbf16>
    %18 = vector.shape_cast %17 : vector<1x128x288xbf16> to vector<128x288xbf16>
    %cst_10 = arith.constant dense<0.000000e+00> : vector<256x288xf32>
    %19 = tpu.matmul %16, %18, %cst_10 {dimension_numbers = #tpu.dot_dimension_numbers<[1], [0], [0], [1], [0, 0, 1, 1], [], []>} : vector<256x128xbf16>, vector<128x288xbf16>, vector<256x288xf32> -> vector<256x288xf32>
    %20 = vector.shape_cast %19 : vector<256x288xf32> to vector<16x16x288xf32>
    %c0_i32_11 = arith.constant 0 : i32
    %21 = arith.sitofp %c0_i32_11 : i32 to f32
    %22 = vector.broadcast %21 : f32 to vector<1x16x288xf32>
    %23 = tpu.concatenate %22, %20 in 0 : vector<1x16x288xf32>, vector<16x16x288xf32> -> vector<17x16x288xf32>
    %24 = vector.broadcast %21 : f32 to vector<1x16x288xf32>
    %25 = tpu.concatenate %23, %24 in 0 : vector<17x16x288xf32>, vector<1x16x288xf32> -> vector<18x16x288xf32>
    %26 = vector.broadcast %21 : f32 to vector<18x1x288xf32>
    %27 = tpu.concatenate %26, %25 in 1 : vector<18x1x288xf32>, vector<18x16x288xf32> -> vector<18x17x288xf32>
    %28 = vector.broadcast %21 : f32 to vector<18x1x288xf32>
    %29 = tpu.concatenate %27, %28 in 1 : vector<18x17x288xf32>, vector<18x1x288xf32> -> vector<18x18x288xf32>
    %cst_12 = arith.constant 0.000000e+00 : f32
    %30 = vector.broadcast %cst_12 : f32 to vector<16x16x32xf32>
    %31 = vector.extract_strided_slice %29 {offsets = [0, 0, 0], sizes = [16, 16, 32], strides = [1, 1, 1]} : vector<18x18x288xf32> to vector<16x16x32xf32>
    %32 = arith.addf %30, %31 : vector<16x16x32xf32>
    %33 = vector.extract_strided_slice %29 {offsets = [0, 1, 32], sizes = [16, 16, 32], strides = [1, 1, 1]} : vector<18x18x288xf32> to vector<16x16x32xf32>
    %34 = arith.addf %32, %33 : vector<16x16x32xf32>
    %35 = vector.extract_strided_slice %29 {offsets = [0, 2, 64], sizes = [16, 16, 32], strides = [1, 1, 1]} : vector<18x18x288xf32> to vector<16x16x32xf32>
    %36 = arith.addf %34, %35 : vector<16x16x32xf32>
    %37 = vector.extract_strided_slice %29 {offsets = [1, 0, 96], sizes = [16, 16, 32], strides = [1, 1, 1]} : vector<18x18x288xf32> to vector<16x16x32xf32>
    %38 = arith.addf %36, %37 : vector<16x16x32xf32>
    %39 = vector.extract_strided_slice %29 {offsets = [1, 1, 128], sizes = [16, 16, 32], strides = [1, 1, 1]} : vector<18x18x288xf32> to vector<16x16x32xf32>
    %40 = arith.addf %38, %39 : vector<16x16x32xf32>
    %41 = vector.extract_strided_slice %29 {offsets = [1, 2, 160], sizes = [16, 16, 32], strides = [1, 1, 1]} : vector<18x18x288xf32> to vector<16x16x32xf32>
    %42 = arith.addf %40, %41 : vector<16x16x32xf32>
    %43 = vector.extract_strided_slice %29 {offsets = [2, 0, 192], sizes = [16, 16, 32], strides = [1, 1, 1]} : vector<18x18x288xf32> to vector<16x16x32xf32>
    %44 = arith.addf %42, %43 : vector<16x16x32xf32>
    %45 = vector.extract_strided_slice %29 {offsets = [2, 1, 224], sizes = [16, 16, 32], strides = [1, 1, 1]} : vector<18x18x288xf32> to vector<16x16x32xf32>
    %46 = arith.addf %44, %45 : vector<16x16x32xf32>
    %47 = vector.extract_strided_slice %29 {offsets = [2, 2, 256], sizes = [16, 16, 32], strides = [1, 1, 1]} : vector<18x18x288xf32> to vector<16x16x32xf32>
    %48 = arith.addf %46, %47 : vector<16x16x32xf32>
    %c0_i32_13 = arith.constant 0 : i32
    %49 = arith.cmpi eq, %arg1, %c0_i32_13 : i32
    %50 = arith.extui %49 : i1 to i32
    %c0_i32_14 = arith.constant 0 : i32
    %51 = arith.cmpi ne, %50, %c0_i32_14 : i32
    scf.if %51 {
      %c0_17 = arith.constant 0 : index
      %c0_18 = arith.constant 0 : index
      %c0_19 = arith.constant 0 : index
      %c32 = arith.constant 32 : index
      %58 = vector.load %arg5[%c0_17, %c0_18, %c0_19, %c32] : memref<1x16x16x128xf32, #tpu.memory_space<vmem>>, vector<1x16x16x32xf32>
      %59 = vector.shape_cast %58 : vector<1x16x16x32xf32> to vector<16x16x32xf32>
      %60 = vector.shape_cast %48 : vector<16x16x32xf32> to vector<1x16x16x32xf32>
      tpu.vector_store %arg5[%c0_17, %c0_18, %c0_19, %c32], %60 {strides = array<i32>} : memref<1x16x16x128xf32, #tpu.memory_space<vmem>>, vector<1x16x16x32xf32>,
    } else {
    }
    %c1_i32 = arith.constant 1 : i32
    %52 = arith.cmpi eq, %arg1, %c1_i32 : i32
    %53 = arith.extui %52 : i1 to i32
    %c0_i32_15 = arith.constant 0 : i32
    %54 = arith.cmpi ne, %53, %c0_i32_15 : i32
    scf.if %54 {
      %c0_17 = arith.constant 0 : index
      %c0_18 = arith.constant 0 : index
      %c0_19 = arith.constant 0 : index
      %c64 = arith.constant 64 : index
      %58 = vector.load %arg5[%c0_17, %c0_18, %c0_19, %c64] : memref<1x16x16x128xf32, #tpu.memory_space<vmem>>, vector<1x16x16x32xf32>
      %59 = vector.shape_cast %58 : vector<1x16x16x32xf32> to vector<16x16x32xf32>
      %60 = vector.shape_cast %48 : vector<16x16x32xf32> to vector<1x16x16x32xf32>
      tpu.vector_store %arg5[%c0_17, %c0_18, %c0_19, %c64], %60 {strides = array<i32>} : memref<1x16x16x128xf32, #tpu.memory_space<vmem>>, vector<1x16x16x32xf32>,
    } else {
    }
    %c2_i32 = arith.constant 2 : i32
    %55 = arith.cmpi eq, %arg1, %c2_i32 : i32
    %56 = arith.extui %55 : i1 to i32
    %c0_i32_16 = arith.constant 0 : i32
    %57 = arith.cmpi ne, %56, %c0_i32_16 : i32
    scf.if %57 {
      %c0_17 = arith.constant 0 : index
      %c0_18 = arith.constant 0 : index
      %c0_19 = arith.constant 0 : index
      %c96 = arith.constant 96 : index
      %58 = vector.load %arg5[%c0_17, %c0_18, %c0_19, %c96] : memref<1x16x16x128xf32, #tpu.memory_space<vmem>>, vector<1x16x16x32xf32>
      %59 = vector.shape_cast %58 : vector<1x16x16x32xf32> to vector<16x16x32xf32>
      %60 = vector.shape_cast %48 : vector<16x16x32xf32> to vector<1x16x16x32xf32>
      tpu.vector_store %arg5[%c0_17, %c0_18, %c0_19, %c96], %60 {strides = array<i32>} : memref<1x16x16x128xf32, #tpu.memory_space<vmem>>, vector<1x16x16x32xf32>,
    } else {
    }
    return
  }
  func.func @transform_0(%arg0: i32, %arg1: i32) -> (i32, i32, i32, i32) {
    %c0_i32 = arith.constant 0 : i32
    %c0_i32_0 = arith.constant 0 : i32
    %c0_i32_1 = arith.constant 0 : i32
    %c0_i32_2 = arith.constant 0 : i32
    return %arg0, %c0_i32, %c0_i32_0, %c0_i32_1 : i32, i32, i32, i32
  }
  func.func @transform_1(%arg0: i32, %arg1: i32) -> (i32, i32, i32) {
    %c0_i32 = arith.constant 0 : i32
    %c0_i32_0 = arith.constant 0 : i32
    %c0_i32_1 = arith.constant 0 : i32
    return %arg1, %c0_i32, %c0_i32_0 : i32, i32, i32
  }
  func.func @transform_2(%arg0: i32, %arg1: i32) -> (i32, i32, i32) {
    %c0_i32 = arith.constant 0 : i32
    %c0_i32_0 = arith.constant 0 : i32
    %c0_i32_1 = arith.constant 0 : i32
    return %arg1, %c0_i32, %c0_i32_0 : i32, i32, i32
  }
  func.func @transform_3(%arg0: i32, %arg1: i32) -> (i32, i32, i32, i32) {
    %c0_i32 = arith.constant 0 : i32
    %c0_i32_0 = arith.constant 0 : i32
    %c0_i32_1 = arith.constant 0 : i32
    %c0_i32_2 = arith.constant 0 : i32
    return %arg0, %c0_i32, %c0_i32_0, %c0_i32_1 : i32, i32, i32, i32
  }
}

</mosaic_0001>

<llo_original>
// kernel: dense_block_forward.1
$region0: #{dense_block_forward.1}
  #allocation0 [shape = 'u32[]', space=smem, size = 0x4, offset = 0x4, fixed_abs, tag = 'smem constant byte address 0x4 - core index']
  #allocation1 [shape = 'u32[144,128]{1,0:T(1,128)}', space=vmem, size = 0x12000, scoped, tag = 'internal scratch']
  %s0 = inlined_call_operand.vmem [shape: f32[2,16,16,32], index: 0, kind: input, shape index: {}]
  %s1 = inlined_call_operand.vmem [shape: f32[3,2,128], index: 1, kind: input, shape index: {}]
  %s2 = inlined_call_operand.vmem [shape: bf16[3,128,288], index: 2, kind: input, shape index: {}]
  %s3 = inlined_call_operand.hbm [shape: f32[2,16,16,128], index: 3, kind: output, shape index: {}]
  %s4 = sld [smem:[#allocation0]]
  $region61: #{dense_block_forward.1} parent=0
    _
  %s6 = ssub.s32 1, %s4
  %s7 = scalar_select 0, %s6, %s4
  $region1: #{dense_block_forward.1} parent=0
    #allocation2 [shape = 'u8[262144]{0}', space=vmem, size = 0x40000, scoped, tag = 'output window, operand 0']
    #allocation3 [shape = 's32[2]{0}', space=sflag, size = 0x8, scoped, tag = 'scoped memory for dense_block_forward.1']
    %8 = vsyncpa [#allocation3], 0
    %s9 = scalar_lea.sflag [#allocation3], 1
    %10 = vsyncpa %s9, 0
    loop: start=0, step=1, limit=8
    $region2: #{dense_block_forward.1} parent=1 // loop_pre_header
      _
    $region3: #{dense_block_forward.1} parent=1 // loop_header
      %s12 = sphi 0, %s16
      %p13 = scmp.ge.s32.totalorder %s12, 8
      %s19 = sphi 0, %s31
      %s20 = sphi 0, %s27
      %s21 = sphi 0, %s19
      %s22 = sphi 0, %s20
      %s23 = sphi 0, %s21
      %s24 = sphi 0, %s22
      %s34 = sphi 0, %s36
      %s37 = sphi 0, %s34
      %s38 = sphi 0, %s37
      %s54 = sphi 0, %s38
      %s60 = sphi 0, %s62
      %s63 = sphi 0, %s60
      %s64 = sphi 0, %s63
      %s80 = sphi 0, %s64
      %s86 = sphi 0, %s88
      %s89 = sphi 0, %s86
      %s90 = sphi 0, %s89
      %s106 = sphi 0, %s90
      %s112 = sphi 0, %s114
      %s115 = sphi 0, %s112
      %s116 = sphi 0, %s115
      %s132 = sphi 0, %s116
    $region4: #{dense_block_forward.1} parent=1 // loop_header_branch
      %15 = sbr.rel (%p13) target = $region8
    $region5: #{dense_block_forward.1} parent=1 // loop_body
      %s17 = ssub.s32 %s12, 1
      %s18 = ssub.s32 %s12, 2
      %s25 = sadd.s32 1, %s20
      %p26 = scmp.ge.s32.totalorder %s25, 3
      %s27 = scalar_select %p26, 0, %s25
      %s28 = sadd.s32 1, %s19
      %s29 = scalar_select %p26, %s28, %s19
      %p30 = scmp.ge.s32.totalorder %s29, 2
      %s31 = scalar_select %p30, 0, %s29
      %s32 = ssub.s32 %s19, %s31
      %p33 = scmp.eq.s32.totalorder %s32, 0
      %s35 = sadd.s32 %s34, 1
      %s36 = scalar_select %p33, %s34, %s35
      %p39 = pneg %p33
      %p40 = scmp.eq.s32.totalorder %s12, 5
      %p41 = por %p39, %p40
      %p42 = scmp.ne.s32.totalorder %s34, %s37
      %p43 = scmp.eq.s32.totalorder %s12, 0
      %p44 = por %p42, %p43
      %p45 = scmp.ne.s32.totalorder %s34, %s37
      %p46 = scmp.eq.s32.totalorder %s17, 5
      %p47 = por %p45, %p46
      %p48 = scmp.ne.s32.totalorder %s37, %s38
      %p49 = scmp.eq.s32.totalorder %s17, 0
      %p50 = por %p48, %p49
      %p51 = scmp.ne.s32.totalorder %s37, %s38
      %p52 = scmp.eq.s32.totalorder %s18, 5
      %p53 = por %p51, %p52
      %p55 = scmp.ne.s32.totalorder %s38, %s54
      %p56 = scmp.eq.s32.totalorder %s18, 0
      %p57 = por %p55, %p56
      %s58 = ssub.s32 %s20, %s27
      %p59 = scmp.eq.s32.totalorder %s58, 0
      %s61 = sadd.s32 %s60, 1
      %s62 = scalar_select %p59, %s60, %s61
      %p65 = pneg %p59
      %p66 = scmp.eq.s32.totalorder %s12, 5
      %p67 = por %p65, %p66
      %p68 = scmp.ne.s32.totalorder %s60, %s63
      %p69 = scmp.eq.s32.totalorder %s12, 0
      %p70 = por %p68, %p69
      %p71 = scmp.ne.s32.totalorder %s60, %s63
      %p72 = scmp.eq.s32.totalorder %s17, 5
      %p73 = por %p71, %p72
      %p74 = scmp.ne.s32.totalorder %s63, %s64
      %p75 = scmp.eq.s32.totalorder %s17, 0
      %p76 = por %p74, %p75
      %p77 = scmp.ne.s32.totalorder %s63, %s64
      %p78 = scmp.eq.s32.totalorder %s18, 5
      %p79 = por %p77, %p78
      %p81 = scmp.ne.s32.totalorder %s64, %s80
      %p82 = scmp.eq.s32.totalorder %s18, 0
      %p83 = por %p81, %p82
      %s84 = ssub.s32 %s20, %s27
      %p85 = scmp.eq.s32.totalorder %s84, 0
      %s87 = sadd.s32 %s86, 1
      %s88 = scalar_select %p85, %s86, %s87
      %p91 = pneg %p85
      %p92 = scmp.eq.s32.totalorder %s12, 5
      %p93 = por %p91, %p92
      %p94 = scmp.ne.s32.totalorder %s86, %s89
      %p95 = scmp.eq.s32.totalorder %s12, 0
      %p96 = por %p94, %p95
      %p97 = scmp.ne.s32.totalorder %s86, %s89
      %p98 = scmp.eq.s32.totalorder %s17, 5
      %p99 = por %p97, %p98
      %p100 = scmp.ne.s32.totalorder %s89, %s90
      %p101 = scmp.eq.s32.totalorder %s17, 0
      %p102 = por %p100, %p101
      %p103 = scmp.ne.s32.totalorder %s89, %s90
      %p104 = scmp.eq.s32.totalorder %s18, 5
      %p105 = por %p103, %p104
      %p107 = scmp.ne.s32.totalorder %s90, %s106
      %p108 = scmp.eq.s32.totalorder %s18, 0
      %p109 = por %p107, %p108
      %s110 = ssub.s32 %s19, %s31
      %p111 = scmp.eq.s32.totalorder %s110, 0
      %s113 = sadd.s32 %s112, 1
      %s114 = scalar_select %p111, %s112, %s113
      %p117 = pneg %p111
      %p118 = scmp.eq.s32.totalorder %s12, 5
      %p119 = por %p117, %p118
      %p120 = scmp.ne.s32.totalorder %s112, %s115
      %p121 = scmp.eq.s32.totalorder %s12, 0
      %p122 = por %p120, %p121
      %p123 = scmp.ne.s32.totalorder %s112, %s115
      %p124 = scmp.eq.s32.totalorder %s17, 5
      %p125 = por %p123, %p124
      %p126 = scmp.ne.s32.totalorder %s115, %s116
      %p127 = scmp.eq.s32.totalorder %s17, 0
      %p128 = por %p126, %p127
      %p129 = scmp.ne.s32.totalorder %s115, %s116
      %p130 = scmp.eq.s32.totalorder %s18, 5
      %p131 = por %p129, %p130
      %p133 = scmp.ne.s32.totalorder %s116, %s132
      %p134 = scmp.eq.s32.totalorder %s18, 0
      %p135 = por %p133, %p134
      %p136 = scmp.le.s32.totalorder 1, %s12
      %p137 = scmp.lt.s32.totalorder %s12, 7
      %p138 = pnand %p136, %p137
      %p139 = pneg %p138
      // Predicated region
      $region9: #{dense_block_forward.1} parent=5 // pred_check
        _
      $region10: #{dense_block_forward.1} parent=5 // pred_check_branch
        %141 = sbr.rel (%p138) target = $region12
      $region11: #{dense_block_forward.1} parent=5 // pred_region
        %s142 = ssub.s32 %s12, 1
      $region12: #{dense_block_forward.1} parent=5 // pred_fallthru
        _
      %p143 = scmp.lt.s32.totalorder %s12, 6
      // Predicated region
      $region13: #{dense_block_forward.1} parent=5 // pred_check
        %p144 = pneg %p143
      $region14: #{dense_block_forward.1} parent=5 // pred_check_branch
        %146 = sbr.rel (%p144) target = $region16
      $region15: #{dense_block_forward.1} parent=5 // pred_region
        // Predicated region
        $region17: #{dense_block_forward.1} parent=15 // pred_check
          %p147 = pneg %p44
        $region18: #{dense_block_forward.1} parent=15 // pred_check_branch
          %149 = sbr.rel (%p147) target = $region20
        $region19: #{dense_block_forward.1} parent=15 // pred_region
          %p150 = scmp.lt.s32.totalorder %s19, 1
          %s151 = scalar_select %p150, %s19, 1
          %s152 = smul.addr %s151, 32
          %s153 = smul.addr %s152, 8
          %s154 = scalar_lea.vmem %s0, %s153
        $region20: #{dense_block_forward.1} parent=15 // pred_fallthru
          _
        // Predicated region
        $region21: #{dense_block_forward.1} parent=15 // pred_check
          %p155 = pneg %p70
        $region22: #{dense_block_forward.1} parent=15 // pred_check_branch
          %157 = sbr.rel (%p155) target = $region24
        $region23: #{dense_block_forward.1} parent=15 // pred_region
          %p158 = scmp.lt.s32.totalorder %s20, 2
          %s159 = scalar_select %p158, %s20, 2
          %s160 = smul.addr %s159, 2
          %s161 = scalar_lea.vmem %s1, %s160
        $region24: #{dense_block_forward.1} parent=15 // pred_fallthru
          _
        // Predicated region
        $region25: #{dense_block_forward.1} parent=15 // pred_check
          %p162 = pneg %p96
        $region26: #{dense_block_forward.1} parent=15 // pred_check_branch
          %164 = sbr.rel (%p162) target = $region28
        $region27: #{dense_block_forward.1} parent=15 // pred_region
          %p165 = scmp.lt.s32.totalorder %s20, 2
          %s166 = scalar_select %p165, %s20, 2
          %s167 = smul.addr %s166, 48
          %s168 = smul.addr %s167, 4
          %s169 = scalar_lea.vmem %s2, %s168
        $region28: #{dense_block_forward.1} parent=15 // pred_fallthru
          _
      $region16: #{dense_block_forward.1} parent=5 // pred_fallthru
        _
      %p170 = scmp.le.s32.totalorder 1, %s12
      %p171 = scmp.lt.s32.totalorder %s12, 7
      %p172 = pnand %p170, %p171
      %p173 = pneg %p172
      // Predicated region
      $region29: #{dense_block_forward.1} parent=5 // pred_check
        _
      $region30: #{dense_block_forward.1} parent=5 // pred_check_branch
        %175 = sbr.rel (%p172) target = $region32
      $region31: #{dense_block_forward.1} parent=5 // pred_region
        %s176 = ssub.s32 %s12, 1
        %p177 = scmp.lt.s32.totalorder %s21, 1
        %s178 = scalar_select %p177, %s21, 1
        %s179 = smul.addr %s178, 32
        %s180 = smul.addr %s179, 8
        %s181 = scalar_lea.vmem %s0, %s180
        %p182 = pneg %p50
        %p183 = pneg %p47
        %p184 = scmp.lt.s32.totalorder %s22, 2
        %s185 = scalar_select %p184, %s22, 2
        %s186 = smul.addr %s185, 2
        %s187 = scalar_lea.vmem %s1, %s186
        %p188 = pneg %p76
        %p189 = pneg %p73
        %p190 = scmp.lt.s32.totalorder %s22, 2
        %s191 = scalar_select %p190, %s22, 2
        %s192 = smul.addr %s191, 48
        %s193 = smul.addr %s192, 4
        %s194 = scalar_lea.vmem %s2, %s193
        %p195 = pneg %p102
        %p196 = pneg %p99
        %p197 = pneg %p128
        %p198 = pneg %p125
        %s199 = sand.u32 %s115, 1
        %s200 = scalar_lea.sflag [#allocation3], %s199
        %s201 = sand.u32 %s115, 1
        %s202 = smul.addr %s201, 256
        %s203 = scalar_lea.vmem [#allocation2], %s202
        %p204 = scmp.lt.s32.totalorder %s21, 1
        %s205 = scalar_select %p204, %s21, 1
        %s206 = smul.addr %s205, 32
        %s207 = smul.addr %s206, 8
        %s208 = scalar_lea.vmem %s0, %s207
        %p209 = scmp.lt.s32.totalorder %s22, 2
        %s210 = scalar_select %p209, %s22, 2
        %s211 = smul.addr %s210, 2
        %s212 = scalar_lea.vmem %s1, %s211
        %p213 = scmp.lt.s32.totalorder %s22, 2
        %s214 = scalar_select %p213, %s22, 2
        %s215 = smul.addr %s214, 48
        %s216 = smul.addr %s215, 4
        %s217 = scalar_lea.vmem %s2, %s216
        %p219 = scmp.eq.s32.totalorder %s22, 0
        // Predicated region
        $region33: #{dense_block_forward.1} parent=31 // pred_check
          %p220 = pneg %p219
        $region34: #{dense_block_forward.1} parent=31 // pred_check_branch
          %222 = sbr.rel (%p220) target = $region36
        $region35: #{dense_block_forward.1} parent=31 // pred_region
          %v223 = vld [vmem:[%s208] sm:$0xff]
          %v224 = vld [vmem:[%s208 + $0x8] sm:$0xff]
          %v225 = vld [vmem:[%s208 + $0x10] sm:$0xff]
          %v226 = vld [vmem:[%s208 + $0x18] sm:$0xff]
          %v227 = vld [vmem:[%s208 + $0x20] sm:$0xff]
          %v228 = vld [vmem:[%s208 + $0x28] sm:$0xff]
          %v229 = vld [vmem:[%s208 + $0x30] sm:$0xff]
          %v230 = vld [vmem:[%s208 + $0x38] sm:$0xff]
          %v231 = vld [vmem:[%s208 + $0x40] sm:$0xff]
          %v232 = vld [vmem:[%s208 + $0x48] sm:$0xff]
          %v233 = vld [vmem:[%s208 + $0x50] sm:$0xff]
          %v234 = vld [vmem:[%s208 + $0x58] sm:$0xff]
          %v235 = vld [vmem:[%s208 + $0x60] sm:$0xff]
          %v236 = vld [vmem:[%s208 + $0x68] sm:$0xff]
          %v237 = vld [vmem:[%s208 + $0x70] sm:$0xff]
          %v238 = vld [vmem:[%s208 + $0x78] sm:$0xff]
          %v239 = vld [vmem:[%s208 + $0x80] sm:$0xff]
          %v240 = vld [vmem:[%s208 + $0x88] sm:$0xff]
          %v241 = vld [vmem:[%s208 + $0x90] sm:$0xff]
          %v242 = vld [vmem:[%s208 + $0x98] sm:$0xff]
          %v243 = vld [vmem:[%s208 + $0xa0] sm:$0xff]
          %v244 = vld [vmem:[%s208 + $0xa8] sm:$0xff]
          %v245 = vld [vmem:[%s208 + $0xb0] sm:$0xff]
          %v246 = vld [vmem:[%s208 + $0xb8] sm:$0xff]
          %v247 = vld [vmem:[%s208 + $0xc0] sm:$0xff]
          %v248 = vld [vmem:[%s208 + $0xc8] sm:$0xff]
          %v249 = vld [vmem:[%s208 + $0xd0] sm:$0xff]
          %v250 = vld [vmem:[%s208 + $0xd8] sm:$0xff]
          %v251 = vld [vmem:[%s208 + $0xe0] sm:$0xff]
          %v252 = vld [vmem:[%s208 + $0xe8] sm:$0xff]
          %v253 = vld [vmem:[%s208 + $0xf0] sm:$0xff]
          %v254 = vld [vmem:[%s208 + $0xf8] sm:$0xff]
          %vm255 = vcmask 261120
          %256 = vst.msk [vmem:[%s203] sm:$0xff] %vm255, %v223
          %257 = vst.msk [vmem:[%s203 + $0x8] sm:$0xff] %vm255, %v224
          %258 = vst.msk [vmem:[%s203 + $0x10] sm:$0xff] %vm255, %v225
          %259 = vst.msk [vmem:[%s203 + $0x18] sm:$0xff] %vm255, %v226
          %260 = vst.msk [vmem:[%s203 + $0x20] sm:$0xff] %vm255, %v227
          %261 = vst.msk [vmem:[%s203 + $0x28] sm:$0xff] %vm255, %v228
          %262 = vst.msk [vmem:[%s203 + $0x30] sm:$0xff] %vm255, %v229
          %263 = vst.msk [vmem:[%s203 + $0x38] sm:$0xff] %vm255, %v230
          %264 = vst.msk [vmem:[%s203 + $0x40] sm:$0xff] %vm255, %v231
          %265 = vst.msk [vmem:[%s203 + $0x48] sm:$0xff] %vm255, %v232
          %266 = vst.msk [vmem:[%s203 + $0x50] sm:$0xff] %vm255, %v233
          %267 = vst.msk [vmem:[%s203 + $0x58] sm:$0xff] %vm255, %v234
          %268 = vst.msk [vmem:[%s203 + $0x60] sm:$0xff] %vm255, %v235
          %269 = vst.msk [vmem:[%s203 + $0x68] sm:$0xff] %vm255, %v236
          %270 = vst.msk [vmem:[%s203 + $0x70] sm:$0xff] %vm255, %v237
          %271 = vst.msk [vmem:[%s203 + $0x78] sm:$0xff] %vm255, %v238
          %272 = vst.msk [vmem:[%s203 + $0x80] sm:$0xff] %vm255, %v239
          %273 = vst.msk [vmem:[%s203 + $0x88] sm:$0xff] %vm255, %v240
          %274 = vst.msk [vmem:[%s203 + $0x90] sm:$0xff] %vm255, %v241
          %275 = vst.msk [vmem:[%s203 + $0x98] sm:$0xff] %vm255, %v242
          %276 = vst.msk [vmem:[%s203 + $0xa0] sm:$0xff] %vm255, %v243
          %277 = vst.msk [vmem:[%s203 + $0xa8] sm:$0xff] %vm255, %v244
          %278 = vst.msk [vmem:[%s203 + $0xb0] sm:$0xff] %vm255, %v245
          %279 = vst.msk [vmem:[%s203 + $0xb8] sm:$0xff] %vm255, %v246
          %280 = vst.msk [vmem:[%s203 + $0xc0] sm:$0xff] %vm255, %v247
          %281 = vst.msk [vmem:[%s203 + $0xc8] sm:$0xff] %vm255, %v248
          %282 = vst.msk [vmem:[%s203 + $0xd0] sm:$0xff] %vm255, %v249
          %283 = vst.msk [vmem:[%s203 + $0xd8] sm:$0xff] %vm255, %v250
          %284 = vst.msk [vmem:[%s203 + $0xe0] sm:$0xff] %vm255, %v251
          %285 = vst.msk [vmem:[%s203 + $0xe8] sm:$0xff] %vm255, %v252
          %286 = vst.msk [vmem:[%s203 + $0xf0] sm:$0xff] %vm255, %v253
          %287 = vst.msk [vmem:[%s203 + $0xf8] sm:$0xff] %vm255, %v254
          %vm288 = vcmask 1047808
          %289 = vst.msk [vmem:[%s203] sm:$0xff] %vm288, 0.0
          %290 = vst.msk [vmem:[%s203 + $0x8] sm:$0xff] %vm288, 0.0
          %291 = vst.msk [vmem:[%s203 + $0x10] sm:$0xff] %vm288, 0.0
          %292 = vst.msk [vmem:[%s203 + $0x18] sm:$0xff] %vm288, 0.0
          %293 = vst.msk [vmem:[%s203 + $0x20] sm:$0xff] %vm288, 0.0
          %294 = vst.msk [vmem:[%s203 + $0x28] sm:$0xff] %vm288, 0.0
          %295 = vst.msk [vmem:[%s203 + $0x30] sm:$0xff] %vm288, 0.0
          %296 = vst.msk [vmem:[%s203 + $0x38] sm:$0xff] %vm288, 0.0
          %297 = vst.msk [vmem:[%s203 + $0x40] sm:$0xff] %vm288, 0.0
          %298 = vst.msk [vmem:[%s203 + $0x48] sm:$0xff] %vm288, 0.0
          %299 = vst.msk [vmem:[%s203 + $0x50] sm:$0xff] %vm288, 0.0
          %300 = vst.msk [vmem:[%s203 + $0x58] sm:$0xff] %vm288, 0.0
          %301 = vst.msk [vmem:[%s203 + $0x60] sm:$0xff] %vm288, 0.0
          %302 = vst.msk [vmem:[%s203 + $0x68] sm:$0xff] %vm288, 0.0
          %303 = vst.msk [vmem:[%s203 + $0x70] sm:$0xff] %vm288, 0.0
          %304 = vst.msk [vmem:[%s203 + $0x78] sm:$0xff] %vm288, 0.0
          %305 = vst.msk [vmem:[%s203 + $0x80] sm:$0xff] %vm288, 0.0
          %306 = vst.msk [vmem:[%s203 + $0x88] sm:$0xff] %vm288, 0.0
          %307 = vst.msk [vmem:[%s203 + $0x90] sm:$0xff] %vm288, 0.0
          %308 = vst.msk [vmem:[%s203 + $0x98] sm:$0xff] %vm288, 0.0
          %309 = vst.msk [vmem:[%s203 + $0xa0] sm:$0xff] %vm288, 0.0
          %310 = vst.msk [vmem:[%s203 + $0xa8] sm:$0xff] %vm288, 0.0
          %311 = vst.msk [vmem:[%s203 + $0xb0] sm:$0xff] %vm288, 0.0
          %312 = vst.msk [vmem:[%s203 + $0xb8] sm:$0xff] %vm288, 0.0
          %313 = vst.msk [vmem:[%s203 + $0xc0] sm:$0xff] %vm288, 0.0
          %314 = vst.msk [vmem:[%s203 + $0xc8] sm:$0xff] %vm288, 0.0
          %315 = vst.msk [vmem:[%s203 + $0xd0] sm:$0xff] %vm288, 0.0
          %316 = vst.msk [vmem:[%s203 + $0xd8] sm:$0xff] %vm288, 0.0
          %317 = vst.msk [vmem:[%s203 + $0xe0] sm:$0xff] %vm288, 0.0
          %318 = vst.msk [vmem:[%s203 + $0xe8] sm:$0xff] %vm288, 0.0
          %319 = vst.msk [vmem:[%s203 + $0xf0] sm:$0xff] %vm288, 0.0
          %320 = vst.msk [vmem:[%s203 + $0xf8] sm:$0xff] %vm288, 0.0
        $region36: #{dense_block_forward.1} parent=31 // pred_fallthru
          _
        %v321 = vld [vmem:[%s203] sm:$0xff]
        %v322 = vld [vmem:[%s203 + $0x8] sm:$0xff]
        %v323 = vld [vmem:[%s203 + $0x10] sm:$0xff]
        %v324 = vld [vmem:[%s203 + $0x18] sm:$0xff]
        %v325 = vld [vmem:[%s203 + $0x20] sm:$0xff]
        %v326 = vld [vmem:[%s203 + $0x28] sm:$0xff]
        %v327 = vld [vmem:[%s203 + $0x30] sm:$0xff]
        %v328 = vld [vmem:[%s203 + $0x38] sm:$0xff]
        %v329 = vld [vmem:[%s203 + $0x40] sm:$0xff]
        %v330 = vld [vmem:[%s203 + $0x48] sm:$0xff]
        %v331 = vld [vmem:[%s203 + $0x50] sm:$0xff]
        %v332 = vld [vmem:[%s203 + $0x58] sm:$0xff]
        %v333 = vld [vmem:[%s203 + $0x60] sm:$0xff]
        %v334 = vld [vmem:[%s203 + $0x68] sm:$0xff]
        %v335 = vld [vmem:[%s203 + $0x70] sm:$0xff]
        %v336 = vld [vmem:[%s203 + $0x78] sm:$0xff]
        %v337 = vld [vmem:[%s203 + $0x80] sm:$0xff]
        %v338 = vld [vmem:[%s203 + $0x88] sm:$0xff]
        %v339 = vld [vmem:[%s203 + $0x90] sm:$0xff]
        %v340 = vld [vmem:[%s203 + $0x98] sm:$0xff]
        %v341 = vld [vmem:[%s203 + $0xa0] sm:$0xff]
        %v342 = vld [vmem:[%s203 + $0xa8] sm:$0xff]
        %v343 = vld [vmem:[%s203 + $0xb0] sm:$0xff]
        %v344 = vld [vmem:[%s203 + $0xb8] sm:$0xff]
        %v345 = vld [vmem:[%s203 + $0xc0] sm:$0xff]
        %v346 = vld [vmem:[%s203 + $0xc8] sm:$0xff]
        %v347 = vld [vmem:[%s203 + $0xd0] sm:$0xff]
        %v348 = vld [vmem:[%s203 + $0xd8] sm:$0xff]
        %v349 = vld [vmem:[%s203 + $0xe0] sm:$0xff]
        %v350 = vld [vmem:[%s203 + $0xe8] sm:$0xff]
        %v351 = vld [vmem:[%s203 + $0xf0] sm:$0xff]
        %v352 = vld [vmem:[%s203 + $0xf8] sm:$0xff]
        %v353 = vld [vmem:[%s212] sm:$0x3]
        %v354 = vlaneseq
        %v355 = vshrl.u32 %v354, 7
        %v356 = vsub.s32 0, %v355
        %v357 = vrot.slane %v353, %v356
        %v358 = vmul.f32 %v321, %v357
        %v359 = vmul.f32 %v322, %v357
        %v360 = vmul.f32 %v323, %v357
        %v361 = vmul.f32 %v324, %v357
        %v362 = vmul.f32 %v325, %v357
        %v363 = vmul.f32 %v326, %v357
        %v364 = vmul.f32 %v327, %v357
        %v365 = vmul.f32 %v328, %v357
        %v366 = vmul.f32 %v329, %v357
        %v367 = vmul.f32 %v330, %v357
        %v368 = vmul.f32 %v331, %v357
        %v369 = vmul.f32 %v332, %v357
        %v370 = vmul.f32 %v333, %v357
        %v371 = vmul.f32 %v334, %v357
        %v372 = vmul.f32 %v335, %v357
        %v373 = vmul.f32 %v336, %v357
        %v374 = vmul.f32 %v337, %v357
        %v375 = vmul.f32 %v338, %v357
        %v376 = vmul.f32 %v339, %v357
        %v377 = vmul.f32 %v340, %v357
        %v378 = vmul.f32 %v341, %v357
        %v379 = vmul.f32 %v342, %v357
        %v380 = vmul.f32 %v343, %v357
        %v381 = vmul.f32 %v344, %v357
        %v382 = vmul.f32 %v345, %v357
        %v383 = vmul.f32 %v346, %v357
        %v384 = vmul.f32 %v347, %v357
        %v385 = vmul.f32 %v348, %v357
        %v386 = vmul.f32 %v349, %v357
        %v387 = vmul.f32 %v350, %v357
        %v388 = vmul.f32 %v351, %v357
        %v389 = vmul.f32 %v352, %v357
        %v390 = vlaneseq
        %v391 = vshrl.u32 %v390, 7
        %v392 = vsub.s32 1, %v391
        %v393 = vrot.slane %v353, %v392
        %v394 = vadd.f32 %v358, %v393
        %v395 = vadd.f32 %v359, %v393
        %v396 = vadd.f32 %v360, %v393
        %v397 = vadd.f32 %v361, %v393
        %v398 = vadd.f32 %v362, %v393
        %v399 = vadd.f32 %v363, %v393
        %v400 = vadd.f32 %v364, %v393
        %v401 = vadd.f32 %v365, %v393
        %v402 = vadd.f32 %v366, %v393
        %v403 = vadd.f32 %v367, %v393
        %v404 = vadd.f32 %v368, %v393
        %v405 = vadd.f32 %v369, %v393
        %v406 = vadd.f32 %v370, %v393
        %v407 = vadd.f32 %v371, %v393
        %v408 = vadd.f32 %v372, %v393
        %v409 = vadd.f32 %v373, %v393
        %v410 = vadd.f32 %v374, %v393
        %v411 = vadd.f32 %v375, %v393
        %v412 = vadd.f32 %v376, %v393
        %v413 = vadd.f32 %v377, %v393
        %v414 = vadd.f32 %v378, %v393
        %v415 = vadd.f32 %v379, %v393
        %v416 = vadd.f32 %v380, %v393
        %v417 = vadd.f32 %v381, %v393
        %v418 = vadd.f32 %v382, %v393
        %v419 = vadd.f32 %v383, %v393
        %v420 = vadd.f32 %v384, %v393
        %v421 = vadd.f32 %v385, %v393
        %v422 = vadd.f32 %v386, %v393
        %v423 = vadd.f32 %v387, %v393
        %v424 = vadd.f32 %v388, %v393
        %v425 = vadd.f32 %v389, %v393
        %v426 = vmax.f32 %v394, 0.0
        %v427 = vmax.f32 %v395, 0.0
        %v428 = vmax.f32 %v396, 0.0
        %v429 = vmax.f32 %v397, 0.0
        %v430 = vmax.f32 %v398, 0.0
        %v431 = vmax.f32 %v399, 0.0
        %v432 = vmax.f32 %v400, 0.0
        %v433 = vmax.f32 %v401, 0.0
        %v434 = vmax.f32 %v402, 0.0
        %v435 = vmax.f32 %v403, 0.0
        %v436 = vmax.f32 %v404, 0.0
        %v437 = vmax.f32 %v405, 0.0
        %v438 = vmax.f32 %v406, 0.0
        %v439 = vmax.f32 %v407, 0.0
        %v440 = vmax.f32 %v408, 0.0
        %v441 = vmax.f32 %v409, 0.0
        %v442 = vmax.f32 %v410, 0.0
        %v443 = vmax.f32 %v411, 0.0
        %v444 = vmax.f32 %v412, 0.0
        %v445 = vmax.f32 %v413, 0.0
        %v446 = vmax.f32 %v414, 0.0
        %v447 = vmax.f32 %v415, 0.0
        %v448 = vmax.f32 %v416, 0.0
        %v449 = vmax.f32 %v417, 0.0
        %v450 = vmax.f32 %v418, 0.0
        %v451 = vmax.f32 %v419, 0.0
        %v452 = vmax.f32 %v420, 0.0
        %v453 = vmax.f32 %v421, 0.0
        %v454 = vmax.f32 %v422, 0.0
        %v455 = vmax.f32 %v423, 0.0
        %v456 = vmax.f32 %v424, 0.0
        %v457 = vmax.f32 %v425, 0.0
        %v458 = vpack.c.bf16 %v427, %v426
        %v459 = vpack.c.bf16 %v429, %v428
        %v460 = vpack.c.bf16 %v431, %v430
        %v461 = vpack.c.bf16 %v433, %v432
        %v462 = vpack.c.bf16 %v435, %v434
        %v463 = vpack.c.bf16 %v437, %v436
        %v464 = vpack.c.bf16 %v439, %v438
        %v465 = vpack.c.bf16 %v441, %v440
        %v466 = vpack.c.bf16 %v443, %v442
        %v467 = vpack.c.bf16 %v445, %v444
        %v468 = vpack.c.bf16 %v447, %v446
        %v469 = vpack.c.bf16 %v449, %v448
        %v470 = vpack.c.bf16 %v451, %v450
        %v471 = vpack.c.bf16 %v453, %v452
        %v472 = vpack.c.bf16 %v455, %v454
        %v473 = vpack.c.bf16 %v457, %v456
        %v474 = vld [vmem:[%s217] sm:$0xff]
        %v475 = vld [vmem:[%s217 + $0x8] sm:$0xf]
        %v476 = vld [vmem:[%s217 + $0xc] sm:$0xff]
        %v477 = vld [vmem:[%s217 + $0x14] sm:$0xf]
        %v478 = vld [vmem:[%s217 + $0x18] sm:$0xff]
        %v479 = vld [vmem:[%s217 + $0x20] sm:$0xf]
        %v480 = vld [vmem:[%s217 + $0x24] sm:$0xff]
        %v481 = vld [vmem:[%s217 + $0x2c] sm:$0xf]
        %v482 = vld [vmem:[%s217 + $0x30] sm:$0xff]
        %v483 = vld [vmem:[%s217 + $0x38] sm:$0xf]
        %v484 = vld [vmem:[%s217 + $0x3c] sm:$0xff]
        %v485 = vld [vmem:[%s217 + $0x44] sm:$0xf]
        %v486 = vld [vmem:[%s217 + $0x48] sm:$0xff]
        %v487 = vld [vmem:[%s217 + $0x50] sm:$0xf]
        %v488 = vld [vmem:[%s217 + $0x54] sm:$0xff]
        %v489 = vld [vmem:[%s217 + $0x5c] sm:$0xf]
        %v490 = vld [vmem:[%s217 + $0x60] sm:$0xff]
        %v491 = vld [vmem:[%s217 + $0x68] sm:$0xf]
        %v492 = vld [vmem:[%s217 + $0x6c] sm:$0xff]
        %v493 = vld [vmem:[%s217 + $0x74] sm:$0xf]
        %v494 = vld [vmem:[%s217 + $0x78] sm:$0xff]
        %v495 = vld [vmem:[%s217 + $0x80] sm:$0xf]
        %v496 = vld [vmem:[%s217 + $0x84] sm:$0xff]
        %v497 = vld [vmem:[%s217 + $0x8c] sm:$0xf]
        %v498 = vld [vmem:[%s217 + $0x90] sm:$0xff]
        %v499 = vld [vmem:[%s217 + $0x98] sm:$0xf]
        %v500 = vld [vmem:[%s217 + $0x9c] sm:$0xff]
        %v501 = vld [vmem:[%s217 + $0xa4] sm:$0xf]
        %v502 = vld [vmem:[%s217 + $0xa8] sm:$0xff]
        %v503 = vld [vmem:[%s217 + $0xb0] sm:$0xf]
        %v504 = vld [vmem:[%s217 + $0xb4] sm:$0xff]
        %v505 = vld [vmem:[%s217 + $0xbc] sm:$0xf]
        %v538 = vunpack.c.l.b16 %v474
        %v539 = vunpack.c.h.b16 %v474
        %v540 = vunpack.c.l.b16 %v475
        %v541 = vunpack.c.l.b16 %v476
        %v542 = vunpack.c.h.b16 %v476
        %v543 = vunpack.c.l.b16 %v477
        %v544 = vunpack.c.l.b16 %v478
        %v545 = vunpack.c.h.b16 %v478
        %v546 = vunpack.c.l.b16 %v479
        %v547 = vunpack.c.l.b16 %v480
        %v548 = vunpack.c.h.b16 %v480
        %v549 = vunpack.c.l.b16 %v481
        %v550 = vunpack.c.l.b16 %v482
        %v551 = vunpack.c.h.b16 %v482
        %v552 = vunpack.c.l.b16 %v483
        %v553 = vunpack.c.l.b16 %v484
        %v554 = vunpack.c.h.b16 %v484
        %v555 = vunpack.c.l.b16 %v485
        %v556 = vunpack.c.l.b16 %v486
        %v557 = vunpack.c.h.b16 %v486
        %v558 = vunpack.c.l.b16 %v487
        %v559 = vunpack.c.l.b16 %v488
        %v560 = vunpack.c.h.b16 %v488
        %v561 = vunpack.c.l.b16 %v489
        %v562 = vunpack.c.l.b16 %v490
        %v563 = vunpack.c.h.b16 %v490
        %v564 = vunpack.c.l.b16 %v491
        %v565 = vunpack.c.l.b16 %v492
        %v566 = vunpack.c.h.b16 %v492
        %v567 = vunpack.c.l.b16 %v493
        %v568 = vunpack.c.l.b16 %v494
        %v569 = vunpack.c.h.b16 %v494
        %v570 = vunpack.c.l.b16 %v495
        %v571 = vunpack.c.l.b16 %v496
        %v572 = vunpack.c.h.b16 %v496
        %v573 = vunpack.c.l.b16 %v497
        %v574 = vunpack.c.l.b16 %v498
        %v575 = vunpack.c.h.b16 %v498
        %v576 = vunpack.c.l.b16 %v499
        %v577 = vunpack.c.l.b16 %v500
        %v578 = vunpack.c.h.b16 %v500
        %v579 = vunpack.c.l.b16 %v501
        %v580 = vunpack.c.l.b16 %v502
        %v581 = vunpack.c.h.b16 %v502
        %v582 = vunpack.c.l.b16 %v503
        %v583 = vunpack.c.l.b16 %v504
        %v584 = vunpack.c.h.b16 %v504
        %v585 = vunpack.c.l.b16 %v505
        %v586 = vpack.c.b16 %v541, %v538
        %v587 = vpack.c.b16 %v542, %v539
        %v588 = vpack.c.b16 %v543, %v540
        %v589 = vpack.c.b16 %v547, %v544
        %v590 = vpack.c.b16 %v548, %v545
        %v591 = vpack.c.b16 %v549, %v546
        %v592 = vpack.c.b16 %v553, %v550
        %v593 = vpack.c.b16 %v554, %v551
        %v594 = vpack.c.b16 %v555, %v552
        %v595 = vpack.c.b16 %v559, %v556
        %v596 = vpack.c.b16 %v560, %v557
        %v597 = vpack.c.b16 %v561, %v558
        %v598 = vpack.c.b16 %v565, %v562
        %v599 = vpack.c.b16 %v566, %v563
        %v600 = vpack.c.b16 %v567, %v564
        %v601 = vpack.c.b16 %v571, %v568
        %v602 = vpack.c.b16 %v572, %v569
        %v603 = vpack.c.b16 %v573, %v570
        %v604 = vpack.c.b16 %v577, %v574
        %v605 = vpack.c.b16 %v578, %v575
        %v606 = vpack.c.b16 %v579, %v576
        %v607 = vpack.c.b16 %v583, %v580
        %v608 = vpack.c.b16 %v584, %v581
        %v609 = vpack.c.b16 %v585, %v582
        %634 = vmatprep.subr.bf16.mxu0 %v587
        %635 = vmatpush1.bf16.msra.mxu0 %v586
        %636 = vmatprep.subr.bf16.mxu0 %v590
        %637 = vmatpush1.bf16.msra.mxu0 %v589
        %638 = vmatprep.subr.bf16.mxu0 %v593
        %639 = vmatpush1.bf16.msra.mxu0 %v592
        %640 = vmatprep.subr.bf16.mxu0 %v596
        %641 = vmatpush1.bf16.msra.mxu0 %v595
        %642 = vmatprep.subr.bf16.mxu0 %v599
        %643 = vmatpush1.bf16.msra.mxu0 %v598
        %644 = vmatprep.subr.bf16.mxu0 %v602
        %645 = vmatpush1.bf16.msra.mxu0 %v601
        %646 = vmatprep.subr.bf16.mxu0 %v605
        %647 = vmatpush1.bf16.msra.mxu0 %v604
        %648 = vmatprep.subr.bf16.mxu0 %v608
        %649 = vmatpush1.bf16.msra.mxu0 %v607
        %650 = vmatprep.subr.bf16.mxu0 0
        %651 = vmatpush1.bf16.msra.mxu0 0
        %652 = vmatprep.subr.bf16.mxu0 0
        %653 = vmatpush1.bf16.msra.mxu0 0
        %654 = vmatprep.subr.bf16.mxu0 0
        %655 = vmatpush1.bf16.msra.mxu0 0
        %656 = vmatprep.subr.bf16.mxu0 0
        %657 = vmatpush1.bf16.msra.mxu0 0
        %658 = vmatprep.subr.bf16.mxu0 0
        %659 = vmatpush1.bf16.msra.mxu0 0
        %660 = vmatprep.subr.bf16.mxu0 0
        %661 = vmatpush1.bf16.msra.mxu0 0
        %662 = vmatprep.subr.bf16.mxu0 0
        %663 = vmatpush1.bf16.msra.mxu0 0
        %664 = vmatprep.subr.bf16.mxu0 0
        %665 = vmatpush1.bf16.msra.mxu0 0
        %666 = vmatprep.mubr.bf16.mxu0 0
        %667 = vmatmul.mubr.bf16.gmra.mrb[0].mxu0 %v458
        %v668 = vpop.f32.mrb[0].mxu0
        %v669 = vadd.f32 0.0, %v668
        %v670 = vpop.f32.mrb[0].mxu0
        %v671 = vadd.f32 0.0, %v670
        %v672 = vpop.f32.mrb[0].mxu0
        %v673 = vadd.f32 0.0, %v672
        %v674 = vpop.f32.mrb[0].mxu0
        %v675 = vadd.f32 0.0, %v674
        %676 = vmatprep.mubr.bf16.mxu0 0
        %677 = vmatmul.mubr.bf16.gmra.mrb[0].mxu0 %v459
        %v678 = vpop.f32.mrb[0].mxu0
        %v679 = vadd.f32 0.0, %v678
        %v680 = vpop.f32.mrb[0].mxu0
        %v681 = vadd.f32 0.0, %v680
        %v682 = vpop.f32.mrb[0].mxu0
        %v683 = vadd.f32 0.0, %v682
        %v684 = vpop.f32.mrb[0].mxu0
        %v685 = vadd.f32 0.0, %v684
        %686 = vmatprep.mubr.bf16.mxu0 0
        %687 = vmatmul.mubr.bf16.gmra.mrb[0].mxu0 %v460
        %v688 = vpop.f32.mrb[0].mxu0
        %v689 = vadd.f32 0.0, %v688
        %v690 = vpop.f32.mrb[0].mxu0
        %v691 = vadd.f32 0.0, %v690
        %v692 = vpop.f32.mrb[0].mxu0
        %v693 = vadd.f32 0.0, %v692
        %v694 = vpop.f32.mrb[0].mxu0
        %v695 = vadd.f32 0.0, %v694
        %696 = vmatprep.mubr.bf16.mxu0 0
        %697 = vmatmul.mubr.bf16.gmra.mrb[0].mxu0 %v461
        %v698 = vpop.f32.mrb[0].mxu0
        %v699 = vadd.f32 0.0, %v698
        %v700 = vpop.f32.mrb[0].mxu0
        %v701 = vadd.f32 0.0, %v700
        %v702 = vpop.f32.mrb[0].mxu0
        %v703 = vadd.f32 0.0, %v702
        %v704 = vpop.f32.mrb[0].mxu0
        %v705 = vadd.f32 0.0, %v704
        %706 = vmatprep.mubr.bf16.mxu0 0
        %707 = vmatmul.mubr.bf16.gmra.mrb[0].mxu0 %v462
        %v708 = vpop.f32.mrb[0].mxu0
        %v709 = vadd.f32 0.0, %v708
        %v710 = vpop.f32.mrb[0].mxu0
        %v711 = vadd.f32 0.0, %v710
        %v712 = vpop.f32.mrb[0].mxu0
        %v713 = vadd.f32 0.0, %v712
        %v714 = vpop.f32.mrb[0].mxu0
        %v715 = vadd.f32 0.0, %v714
        %716 = vmatprep.mubr.bf16.mxu0 0
        %717 = vmatmul.mubr.bf16.gmra.mrb[0].mxu0 %v463
        %v718 = vpop.f32.mrb[0].mxu0
        %v719 = vadd.f32 0.0, %v718
        %v720 = vpop.f32.mrb[0].mxu0
        %v721 = vadd.f32 0.0, %v720
        %v722 = vpop.f32.mrb[0].mxu0
        %v723 = vadd.f32 0.0, %v722
        %v724 = vpop.f32.mrb[0].mxu0
        %v725 = vadd.f32 0.0, %v724
        %726 = vmatprep.mubr.bf16.mxu0 0
        %727 = vmatmul.mubr.bf16.gmra.mrb[0].mxu0 %v464
        %v728 = vpop.f32.mrb[0].mxu0
        %v729 = vadd.f32 0.0, %v728
        %v730 = vpop.f32.mrb[0].mxu0
        %v731 = vadd.f32 0.0, %v730
        %v732 = vpop.f32.mrb[0].mxu0
        %v733 = vadd.f32 0.0, %v732
        %v734 = vpop.f32.mrb[0].mxu0
        %v735 = vadd.f32 0.0, %v734
        %736 = vmatprep.mubr.bf16.mxu0 0
        %737 = vmatmul.mubr.bf16.gmra.mrb[0].mxu0 %v465
        %v738 = vpop.f32.mrb[0].mxu0
        %v739 = vadd.f32 0.0, %v738
        %v740 = vpop.f32.mrb[0].mxu0
        %v741 = vadd.f32 0.0, %v740
        %v742 = vpop.f32.mrb[0].mxu0
        %v743 = vadd.f32 0.0, %v742
        %v744 = vpop.f32.mrb[0].mxu0
        %v745 = vadd.f32 0.0, %v744
        %746 = vmatprep.mubr.bf16.mxu0 0
        %747 = vmatmul.mubr.bf16.gmra.mrb[0].mxu0 %v466
        %v748 = vpop.f32.mrb[0].mxu0
        %v749 = vadd.f32 0.0, %v748
        %v750 = vpop.f32.mrb[0].mxu0
        %v751 = vadd.f32 0.0, %v750
        %v752 = vpop.f32.mrb[0].mxu0
        %v753 = vadd.f32 0.0, %v752
        %v754 = vpop.f32.mrb[0].mxu0
        %v755 = vadd.f32 0.0, %v754
        %756 = vmatprep.mubr.bf16.mxu0 0
        %757 = vmatmul.mubr.bf16.gmra.mrb[0].mxu0 %v467
        %v758 = vpop.f32.mrb[0].mxu0
        %v759 = vadd.f32 0.0, %v758
        %v760 = vpop.f32.mrb[0].mxu0
        %v761 = vadd.f32 0.0, %v760
        %v762 = vpop.f32.mrb[0].mxu0
        %v763 = vadd.f32 0.0, %v762
        %v764 = vpop.f32.mrb[0].mxu0
        %v765 = vadd.f32 0.0, %v764
        %766 = vmatprep.mubr.bf16.mxu0 0
        %767 = vmatmul.mubr.bf16.gmra.mrb[0].mxu0 %v468
        %v768 = vpop.f32.mrb[0].mxu0
        %v769 = vadd.f32 0.0, %v768
        %v770 = vpop.f32.mrb[0].mxu0
        %v771 = vadd.f32 0.0, %v770
        %v772 = vpop.f32.mrb[0].mxu0
        %v773 = vadd.f32 0.0, %v772
        %v774 = vpop.f32.mrb[0].mxu0
        %v775 = vadd.f32 0.0, %v774
        %776 = vmatprep.mubr.bf16.mxu0 0
        %777 = vmatmul.mubr.bf16.gmra.mrb[0].mxu0 %v469
        %v778 = vpop.f32.mrb[0].mxu0
        %v779 = vadd.f32 0.0, %v778
        %v780 = vpop.f32.mrb[0].mxu0
        %v781 = vadd.f32 0.0, %v780
        %v782 = vpop.f32.mrb[0].mxu0
        %v783 = vadd.f32 0.0, %v782
        %v784 = vpop.f32.mrb[0].mxu0
        %v785 = vadd.f32 0.0, %v784
        %786 = vmatprep.mubr.bf16.mxu0 0
        %787 = vmatmul.mubr.bf16.gmra.mrb[0].mxu0 %v470
        %v788 = vpop.f32.mrb[0].mxu0
        %v789 = vadd.f32 0.0, %v788
        %v790 = vpop.f32.mrb[0].mxu0
        %v791 = vadd.f32 0.0, %v790
        %v792 = vpop.f32.mrb[0].mxu0
        %v793 = vadd.f32 0.0, %v792
        %v794 = vpop.f32.mrb[0].mxu0
        %v795 = vadd.f32 0.0, %v794
        %796 = vmatprep.mubr.bf16.mxu0 0
        %797 = vmatmul.mubr.bf16.gmra.mrb[0].mxu0 %v471
        %v798 = vpop.f32.mrb[0].mxu0
        %v799 = vadd.f32 0.0, %v798
        %v800 = vpop.f32.mrb[0].mxu0
        %v801 = vadd.f32 0.0, %v800
        %v802 = vpop.f32.mrb[0].mxu0
        %v803 = vadd.f32 0.0, %v802
        %v804 = vpop.f32.mrb[0].mxu0
        %v805 = vadd.f32 0.0, %v804
        %806 = vmatprep.mubr.bf16.mxu0 0
        %807 = vmatmul.mubr.bf16.gmra.mrb[0].mxu0 %v472
        %v808 = vpop.f32.mrb[0].mxu0
        %v809 = vadd.f32 0.0, %v808
        %v810 = vpop.f32.mrb[0].mxu0
        %v811 = vadd.f32 0.0, %v810
        %v812 = vpop.f32.mrb[0].mxu0
        %v813 = vadd.f32 0.0, %v812
        %v814 = vpop.f32.mrb[0].mxu0
        %v815 = vadd.f32 0.0, %v814
        %816 = vmatprep.mubr.bf16.mxu0 0
        %817 = vmatmul.mubr.bf16.gmra.mrb[0].mxu0 %v473
        %v818 = vpop.f32.mrb[0].mxu0
        %v819 = vadd.f32 0.0, %v818
        %v820 = vpop.f32.mrb[0].mxu0
        %v821 = vadd.f32 0.0, %v820
        %v822 = vpop.f32.mrb[0].mxu0
        %v823 = vadd.f32 0.0, %v822
        %v824 = vpop.f32.mrb[0].mxu0
        %v825 = vadd.f32 0.0, %v824
        %826 = vdwg.mxu0
        %827 = vmatprep.subr.bf16.mxu0 0
        %828 = vmatpush1.bf16.msra.mxu0 %v588
        %829 = vmatprep.subr.bf16.mxu0 0
        %830 = vmatpush1.bf16.msra.mxu0 %v591
        %831 = vmatprep.subr.bf16.mxu0 0
        %832 = vmatpush1.bf16.msra.mxu0 %v594
        %833 = vmatprep.subr.bf16.mxu0 0
        %834 = vmatpush1.bf16.msra.mxu0 %v597
        %835 = vmatprep.subr.bf16.mxu0 0
        %836 = vmatpush1.bf16.msra.mxu0 %v600
        %837 = vmatprep.subr.bf16.mxu0 0
        %838 = vmatpush1.bf16.msra.mxu0 %v603
        %839 = vmatprep.subr.bf16.mxu0 0
        %840 = vmatpush1.bf16.msra.mxu0 %v606
        %841 = vmatprep.subr.bf16.mxu0 0
        %842 = vmatpush1.bf16.msra.mxu0 %v609
        %843 = vmatprep.subr.bf16.mxu0 0
        %844 = vmatpush1.bf16.msra.mxu0 0
        %845 = vmatprep.subr.bf16.mxu0 0
        %846 = vmatpush1.bf16.msra.mxu0 0
        %847 = vmatprep.subr.bf16.mxu0 0
        %848 = vmatpush1.bf16.msra.mxu0 0
        %849 = vmatprep.subr.bf16.mxu0 0
        %850 = vmatpush1.bf16.msra.mxu0 0
        %851 = vmatprep.subr.bf16.mxu0 0
        %852 = vmatpush1.bf16.msra.mxu0 0
        %853 = vmatprep.subr.bf16.mxu0 0
        %854 = vmatpush1.bf16.msra.mxu0 0
        %855 = vmatprep.subr.bf16.mxu0 0
        %856 = vmatpush1.bf16.msra.mxu0 0
        %857 = vmatprep.subr.bf16.mxu0 0
        %858 = vmatpush1.bf16.msra.mxu0 0
        %859 = vmatprep.mubr.bf16.mxu0 0
        %860 = vmatmul.mubr.bf16.gmra.mrb[0].mxu0 %v458
        %v861 = vpop.f32.mrb[0].mxu0
        %v862 = vpop.f32.mrb[0].mxu0
        %v863 = vpop.f32.mrb[0].mxu0
        %v864 = vpop.f32.mrb[0].mxu0
        %865 = vmatprep.mubr.bf16.mxu0 0
        %866 = vmatmul.mubr.bf16.gmra.mrb[0].mxu0 %v459
        %v867 = vpop.f32.mrb[0].mxu0
        %v868 = vadd.f32 0.0, %v867
        %v869 = vpop.f32.mrb[0].mxu0
        %v870 = vpop.f32.mrb[0].mxu0
        %v871 = vadd.f32 0.0, %v870
        %v872 = vpop.f32.mrb[0].mxu0
        %873 = vmatprep.mubr.bf16.mxu0 0
        %874 = vmatmul.mubr.bf16.gmra.mrb[0].mxu0 %v460
        %v875 = vpop.f32.mrb[0].mxu0
        %v876 = vadd.f32 0.0, %v875
        %v877 = vpop.f32.mrb[0].mxu0
        %v878 = vpop.f32.mrb[0].mxu0
        %v879 = vadd.f32 0.0, %v878
        %v880 = vpop.f32.mrb[0].mxu0
        %881 = vmatprep.mubr.bf16.mxu0 0
        %882 = vmatmul.mubr.bf16.gmra.mrb[0].mxu0 %v461
        %v883 = vpop.f32.mrb[0].mxu0
        %v884 = vadd.f32 0.0, %v883
        %v885 = vpop.f32.mrb[0].mxu0
        %v886 = vpop.f32.mrb[0].mxu0
        %v887 = vadd.f32 0.0, %v886
        %v888 = vpop.f32.mrb[0].mxu0
        %889 = vmatprep.mubr.bf16.mxu0 0
        %890 = vmatmul.mubr.bf16.gmra.mrb[0].mxu0 %v462
        %v891 = vpop.f32.mrb[0].mxu0
        %v892 = vadd.f32 0.0, %v891
        %v893 = vpop.f32.mrb[0].mxu0
        %v894 = vpop.f32.mrb[0].mxu0
        %v895 = vadd.f32 0.0, %v894
        %v896 = vpop.f32.mrb[0].mxu0
        %897 = vmatprep.mubr.bf16.mxu0 0
        %898 = vmatmul.mubr.bf16.gmra.mrb[0].mxu0 %v463
        %v899 = vpop.f32.mrb[0].mxu0
        %v900 = vadd.f32 0.0, %v899
        %v901 = vpop.f32.mrb[0].mxu0
        %v902 = vpop.f32.mrb[0].mxu0
        %v903 = vadd.f32 0.0, %v902
        %v904 = vpop.f32.mrb[0].mxu0
        %905 = vmatprep.mubr.bf16.mxu0 0
        %906 = vmatmul.mubr.bf16.gmra.mrb[0].mxu0 %v464
        %v907 = vpop.f32.mrb[0].mxu0
        %v908 = vadd.f32 0.0, %v907
        %v909 = vpop.f32.mrb[0].mxu0
        %v910 = vpop.f32.mrb[0].mxu0
        %v911 = vadd.f32 0.0, %v910
        %v912 = vpop.f32.mrb[0].mxu0
        %913 = vmatprep.mubr.bf16.mxu0 0
        %914 = vmatmul.mubr.bf16.gmra.mrb[0].mxu0 %v465
        %v915 = vpop.f32.mrb[0].mxu0
        %v916 = vadd.f32 0.0, %v915
        %v917 = vpop.f32.mrb[0].mxu0
        %v918 = vpop.f32.mrb[0].mxu0
        %v919 = vadd.f32 0.0, %v918
        %v920 = vpop.f32.mrb[0].mxu0
        %921 = vmatprep.mubr.bf16.mxu0 0
        %922 = vmatmul.mubr.bf16.gmra.mrb[0].mxu0 %v466
        %v923 = vpop.f32.mrb[0].mxu0
        %v924 = vadd.f32 0.0, %v923
        %v925 = vpop.f32.mrb[0].mxu0
        %v926 = vpop.f32.mrb[0].mxu0
        %v927 = vadd.f32 0.0, %v926
        %v928 = vpop.f32.mrb[0].mxu0
        %929 = vmatprep.mubr.bf16.mxu0 0
        %930 = vmatmul.mubr.bf16.gmra.mrb[0].mxu0 %v467
        %v931 = vpop.f32.mrb[0].mxu0
        %v932 = vadd.f32 0.0, %v931
        %v933 = vpop.f32.mrb[0].mxu0
        %v934 = vpop.f32.mrb[0].mxu0
        %v935 = vadd.f32 0.0, %v934
        %v936 = vpop.f32.mrb[0].mxu0
        %937 = vmatprep.mubr.bf16.mxu0 0
        %938 = vmatmul.mubr.bf16.gmra.mrb[0].mxu0 %v468
        %v939 = vpop.f32.mrb[0].mxu0
        %v940 = vadd.f32 0.0, %v939
        %v941 = vpop.f32.mrb[0].mxu0
        %v942 = vpop.f32.mrb[0].mxu0
        %v943 = vadd.f32 0.0, %v942
        %v944 = vpop.f32.mrb[0].mxu0
        %945 = vmatprep.mubr.bf16.mxu0 0
        %946 = vmatmul.mubr.bf16.gmra.mrb[0].mxu0 %v469
        %v947 = vpop.f32.mrb[0].mxu0
        %v948 = vadd.f32 0.0, %v947
        %v949 = vpop.f32.mrb[0].mxu0
        %v950 = vpop.f32.mrb[0].mxu0
        %v951 = vadd.f32 0.0, %v950
        %v952 = vpop.f32.mrb[0].mxu0
        %953 = vmatprep.mubr.bf16.mxu0 0
        %954 = vmatmul.mubr.bf16.gmra.mrb[0].mxu0 %v470
        %v955 = vpop.f32.mrb[0].mxu0
        %v956 = vadd.f32 0.0, %v955
        %v957 = vpop.f32.mrb[0].mxu0
        %v958 = vpop.f32.mrb[0].mxu0
        %v959 = vadd.f32 0.0, %v958
        %v960 = vpop.f32.mrb[0].mxu0
        %961 = vmatprep.mubr.bf16.mxu0 0
        %962 = vmatmul.mubr.bf16.gmra.mrb[0].mxu0 %v471
        %v963 = vpop.f32.mrb[0].mxu0
        %v964 = vadd.f32 0.0, %v963
        %v965 = vpop.f32.mrb[0].mxu0
        %v966 = vpop.f32.mrb[0].mxu0
        %v967 = vadd.f32 0.0, %v966
        %v968 = vpop.f32.mrb[0].mxu0
        %969 = vmatprep.mubr.bf16.mxu0 0
        %970 = vmatmul.mubr.bf16.gmra.mrb[0].mxu0 %v472
        %v971 = vpop.f32.mrb[0].mxu0
        %v972 = vadd.f32 0.0, %v971
        %v973 = vpop.f32.mrb[0].mxu0
        %v974 = vpop.f32.mrb[0].mxu0
        %v975 = vadd.f32 0.0, %v974
        %v976 = vpop.f32.mrb[0].mxu0
        %977 = vmatprep.mubr.bf16.mxu0 0
        %978 = vmatmul.mubr.bf16.gmra.mrb[0].mxu0 %v473
        %v979 = vpop.f32.mrb[0].mxu0
        %v980 = vadd.f32 0.0, %v979
        %v981 = vpop.f32.mrb[0].mxu0
        %v982 = vpop.f32.mrb[0].mxu0
        %v983 = vadd.f32 0.0, %v982
        %v984 = vpop.f32.mrb[0].mxu0
        %985 = vdwg.mxu0
        %vm1081 = vcmask 1040384
        %v1082 = vrot.slane 0.0, 7
        %v1083 = vsel %vm1081, %v1082, %v1082
        %v1084 = vrot.slane %v669, 7
        %v1085 = vrot.slane %v671, 7
        %v1086 = vrot.slane %v673, 7
        %v1087 = vsel %vm1081, %v1084, %v1086
        %v1088 = vrot.slane %v675, 7
        %v1089 = vsel %vm1081, %v1085, %v1088
        %v1090 = vrot.slane %v679, 7
        %v1091 = vrot.slane %v681, 7
        %v1092 = vrot.slane %v868, 7
        %v1093 = vrot.slane %v683, 7
        %v1094 = vsel %vm1081, %v1090, %v1093
        %v1095 = vrot.slane %v685, 7
        %v1096 = vsel %vm1081, %v1091, %v1095
        %v1097 = vrot.slane %v871, 7
        %v1098 = vsel %vm1081, %v1092, %v1097
        %v1099 = vrot.slane %v689, 7
        %v1100 = vrot.slane %v691, 7
        %v1101 = vrot.slane %v876, 7
        %v1102 = vrot.slane %v693, 7
        %v1103 = vsel %vm1081, %v1099, %v1102
        %v1104 = vrot.slane %v695, 7
        %v1105 = vsel %vm1081, %v1100, %v1104
        %v1106 = vrot.slane %v879, 7
        %v1107 = vsel %vm1081, %v1101, %v1106
        %v1108 = vrot.slane %v699, 7
        %v1109 = vrot.slane %v701, 7
        %v1110 = vrot.slane %v884, 7
        %v1111 = vrot.slane %v703, 7
        %v1112 = vsel %vm1081, %v1108, %v1111
        %v1113 = vrot.slane %v705, 7
        %v1114 = vsel %vm1081, %v1109, %v1113
        %v1115 = vrot.slane %v887, 7
        %v1116 = vsel %vm1081, %v1110, %v1115
        %v1117 = vrot.slane %v709, 7
        %v1118 = vrot.slane %v711, 7
        %v1119 = vrot.slane %v892, 7
        %v1120 = vrot.slane %v713, 7
        %v1121 = vsel %vm1081, %v1117, %v1120
        %v1122 = vrot.slane %v715, 7
        %v1123 = vsel %vm1081, %v1118, %v1122
        %v1124 = vrot.slane %v895, 7
        %v1125 = vsel %vm1081, %v1119, %v1124
        %v1126 = vrot.slane %v719, 7
        %v1127 = vrot.slane %v721, 7
        %v1128 = vrot.slane %v900, 7
        %v1129 = vrot.slane %v723, 7
        %v1130 = vsel %vm1081, %v1126, %v1129
        %v1131 = vrot.slane %v725, 7
        %v1132 = vsel %vm1081, %v1127, %v1131
        %v1133 = vrot.slane %v903, 7
        %v1134 = vsel %vm1081, %v1128, %v1133
        %v1135 = vrot.slane %v729, 7
        %v1136 = vrot.slane %v731, 7
        %v1137 = vrot.slane %v908, 7
        %v1138 = vrot.slane %v733, 7
        %v1139 = vsel %vm1081, %v1135, %v1138
        %v1140 = vrot.slane %v735, 7
        %v1141 = vsel %vm1081, %v1136, %v1140
        %v1142 = vrot.slane %v911, 7
        %v1143 = vsel %vm1081, %v1137, %v1142
        %v1144 = vrot.slane %v739, 7
        %v1145 = vrot.slane %v741, 7
        %v1146 = vrot.slane %v916, 7
        %v1147 = vrot.slane %v743, 7
        %v1148 = vsel %vm1081, %v1144, %v1147
        %v1149 = vrot.slane %v745, 7
        %v1150 = vsel %vm1081, %v1145, %v1149
        %v1151 = vrot.slane %v919, 7
        %v1152 = vsel %vm1081, %v1146, %v1151
        %v1153 = vrot.slane %v749, 7
        %v1154 = vrot.slane %v751, 7
        %v1155 = vrot.slane %v924, 7
        %v1156 = vrot.slane %v753, 7
        %v1157 = vsel %vm1081, %v1153, %v1156
        %v1158 = vrot.slane %v755, 7
        %v1159 = vsel %vm1081, %v1154, %v1158
        %v1160 = vrot.slane %v927, 7
        %v1161 = vsel %vm1081, %v1155, %v1160
        %v1162 = vrot.slane %v759, 7
        %v1163 = vrot.slane %v761, 7
        %v1164 = vrot.slane %v932, 7
        %v1165 = vrot.slane %v763, 7
        %v1166 = vsel %vm1081, %v1162, %v1165
        %v1167 = vrot.slane %v765, 7
        %v1168 = vsel %vm1081, %v1163, %v1167
        %v1169 = vrot.slane %v935, 7
        %v1170 = vsel %vm1081, %v1164, %v1169
        %v1171 = vrot.slane %v769, 7
        %v1172 = vrot.slane %v771, 7
        %v1173 = vrot.slane %v940, 7
        %v1174 = vrot.slane %v773, 7
        %v1175 = vsel %vm1081, %v1171, %v1174
        %v1176 = vrot.slane %v775, 7
        %v1177 = vsel %vm1081, %v1172, %v1176
        %v1178 = vrot.slane %v943, 7
        %v1179 = vsel %vm1081, %v1173, %v1178
        %v1180 = vrot.slane %v779, 7
        %v1181 = vrot.slane %v781, 7
        %v1182 = vrot.slane %v948, 7
        %v1183 = vrot.slane %v783, 7
        %v1184 = vsel %vm1081, %v1180, %v1183
        %v1185 = vrot.slane %v785, 7
        %v1186 = vsel %vm1081, %v1181, %v1185
        %v1187 = vrot.slane %v951, 7
        %v1188 = vsel %vm1081, %v1182, %v1187
        %v1189 = vrot.slane %v789, 7
        %v1190 = vrot.slane %v791, 7
        %v1191 = vrot.slane %v956, 7
        %v1192 = vrot.slane %v793, 7
        %v1193 = vsel %vm1081, %v1189, %v1192
        %v1194 = vrot.slane %v795, 7
        %v1195 = vsel %vm1081, %v1190, %v1194
        %v1196 = vrot.slane %v959, 7
        %v1197 = vsel %vm1081, %v1191, %v1196
        %v1198 = vrot.slane %v799, 7
        %v1199 = vrot.slane %v801, 7
        %v1200 = vrot.slane %v964, 7
        %v1201 = vrot.slane %v803, 7
        %v1202 = vsel %vm1081, %v1198, %v1201
        %v1203 = vrot.slane %v805, 7
        %v1204 = vsel %vm1081, %v1199, %v1203
        %v1205 = vrot.slane %v967, 7
        %v1206 = vsel %vm1081, %v1200, %v1205
        %v1207 = vrot.slane %v809, 7
        %v1208 = vrot.slane %v811, 7
        %v1209 = vrot.slane %v972, 7
        %v1210 = vrot.slane %v813, 7
        %v1211 = vsel %vm1081, %v1207, %v1210
        %v1212 = vrot.slane %v815, 7
        %v1213 = vsel %vm1081, %v1208, %v1212
        %v1214 = vrot.slane %v975, 7
        %v1215 = vsel %vm1081, %v1209, %v1214
        %v1216 = vrot.slane %v819, 7
        %v1217 = vrot.slane %v821, 7
        %v1218 = vrot.slane %v980, 7
        %v1219 = vrot.slane %v823, 7
        %v1220 = vsel %vm1081, %v1216, %v1219
        %v1221 = vrot.slane %v825, 7
        %v1222 = vsel %vm1081, %v1217, %v1221
        %v1223 = vrot.slane %v983, 7
        %v1224 = vsel %vm1081, %v1218, %v1223
        %v1335 = vsel %vm1081, 0.0, %v1082
        %v1336 = vsel %vm1081, 0.0, %v1084
        %v1337 = vsel %vm1081, 0.0, %v1085
        %v1338 = vsel %vm1081, 0.0, %v1090
        %v1339 = vsel %vm1081, 0.0, %v1091
        %v1340 = vsel %vm1081, 0.0, %v1092
        %v1341 = vsel %vm1081, 0.0, %v1099
        %v1342 = vsel %vm1081, 0.0, %v1100
        %v1343 = vsel %vm1081, 0.0, %v1101
        %v1344 = vsel %vm1081, 0.0, %v1108
        %v1345 = vsel %vm1081, 0.0, %v1109
        %v1346 = vsel %vm1081, 0.0, %v1110
        %v1347 = vsel %vm1081, 0.0, %v1117
        %v1348 = vsel %vm1081, 0.0, %v1118
        %v1349 = vsel %vm1081, 0.0, %v1119
        %v1350 = vsel %vm1081, 0.0, %v1126
        %v1351 = vsel %vm1081, 0.0, %v1127
        %v1352 = vsel %vm1081, 0.0, %v1128
        %v1353 = vsel %vm1081, 0.0, %v1135
        %v1354 = vsel %vm1081, 0.0, %v1136
        %v1355 = vsel %vm1081, 0.0, %v1137
        %v1356 = vsel %vm1081, 0.0, %v1144
        %v1357 = vsel %vm1081, 0.0, %v1145
        %v1358 = vsel %vm1081, 0.0, %v1146
        %v1359 = vsel %vm1081, 0.0, %v1153
        %v1360 = vsel %vm1081, 0.0, %v1154
        %v1361 = vsel %vm1081, 0.0, %v1155
        %v1362 = vsel %vm1081, 0.0, %v1162
        %v1363 = vsel %vm1081, 0.0, %v1163
        %v1364 = vsel %vm1081, 0.0, %v1164
        %v1365 = vsel %vm1081, 0.0, %v1171
        %v1366 = vsel %vm1081, 0.0, %v1172
        %v1367 = vsel %vm1081, 0.0, %v1173
        %v1368 = vsel %vm1081, 0.0, %v1180
        %v1369 = vsel %vm1081, 0.0, %v1181
        %v1370 = vsel %vm1081, 0.0, %v1182
        %v1371 = vsel %vm1081, 0.0, %v1189
        %v1372 = vsel %vm1081, 0.0, %v1190
        %v1373 = vsel %vm1081, 0.0, %v1191
        %v1374 = vsel %vm1081, 0.0, %v1198
        %v1375 = vsel %vm1081, 0.0, %v1199
        %v1376 = vsel %vm1081, 0.0, %v1200
        %v1377 = vsel %vm1081, 0.0, %v1207
        %v1378 = vsel %vm1081, 0.0, %v1208
        %v1379 = vsel %vm1081, 0.0, %v1209
        %v1380 = vsel %vm1081, 0.0, %v1216
        %v1381 = vsel %vm1081, 0.0, %v1217
        %v1382 = vsel %vm1081, 0.0, %v1218
        %v1383 = vsel %vm1081, %v1082, 0.0
        %v1384 = vsel %vm1081, %v1086, 0.0
        %v1385 = vsel %vm1081, %v1088, 0.0
        %v1386 = vsel %vm1081, %v1093, 0.0
        %v1387 = vsel %vm1081, %v1095, 0.0
        %v1388 = vsel %vm1081, %v1097, 0.0
        %v1389 = vsel %vm1081, %v1102, 0.0
        %v1390 = vsel %vm1081, %v1104, 0.0
        %v1391 = vsel %vm1081, %v1106, 0.0
        %v1392 = vsel %vm1081, %v1111, 0.0
        %v1393 = vsel %vm1081, %v1113, 0.0
        %v1394 = vsel %vm1081, %v1115, 0.0
        %v1395 = vsel %vm1081, %v1120, 0.0
        %v1396 = vsel %vm1081, %v1122, 0.0
        %v1397 = vsel %vm1081, %v1124, 0.0
        %v1398 = vsel %vm1081, %v1129, 0.0
        %v1399 = vsel %vm1081, %v1131, 0.0
        %v1400 = vsel %vm1081, %v1133, 0.0
        %v1401 = vsel %vm1081, %v1138, 0.0
        %v1402 = vsel %vm1081, %v1140, 0.0
        %v1403 = vsel %vm1081, %v1142, 0.0
        %v1404 = vsel %vm1081, %v1147, 0.0
        %v1405 = vsel %vm1081, %v1149, 0.0
        %v1406 = vsel %vm1081, %v1151, 0.0
        %v1407 = vsel %vm1081, %v1156, 0.0
        %v1408 = vsel %vm1081, %v1158, 0.0
        %v1409 = vsel %vm1081, %v1160, 0.0
        %v1410 = vsel %vm1081, %v1165, 0.0
        %v1411 = vsel %vm1081, %v1167, 0.0
        %v1412 = vsel %vm1081, %v1169, 0.0
        %v1413 = vsel %vm1081, %v1174, 0.0
        %v1414 = vsel %vm1081, %v1176, 0.0
        %v1415 = vsel %vm1081, %v1178, 0.0
        %v1416 = vsel %vm1081, %v1183, 0.0
        %v1417 = vsel %vm1081, %v1185, 0.0
        %v1418 = vsel %vm1081, %v1187, 0.0
        %v1419 = vsel %vm1081, %v1192, 0.0
        %v1420 = vsel %vm1081, %v1194, 0.0
        %v1421 = vsel %vm1081, %v1196, 0.0
        %v1422 = vsel %vm1081, %v1201, 0.0
        %v1423 = vsel %vm1081, %v1203, 0.0
        %v1424 = vsel %vm1081, %v1205, 0.0
        %v1425 = vsel %vm1081, %v1210, 0.0
        %v1426 = vsel %vm1081, %v1212, 0.0
        %v1427 = vsel %vm1081, %v1214, 0.0
        %v1428 = vsel %vm1081, %v1221, 0.0
        %v1429 = vsel %vm1081, %v1223, 0.0
        %v1430 = vadd.f32 %v1335, 0.0
        %v1431 = vadd.f32 %v1083, 0.0
        %v1432 = vadd.f32 %v1336, 0.0
        %v1433 = vadd.f32 %v1087, 0.0
        %v1434 = vadd.f32 %v1338, 0.0
        %v1435 = vadd.f32 %v1094, 0.0
        %v1436 = vadd.f32 %v1341, 0.0
        %v1437 = vadd.f32 %v1103, 0.0
        %v1438 = vadd.f32 %v1344, 0.0
        %v1439 = vadd.f32 %v1112, 0.0
        %v1440 = vadd.f32 %v1347, 0.0
        %v1441 = vadd.f32 %v1121, 0.0
        %v1442 = vadd.f32 %v1350, 0.0
        %v1443 = vadd.f32 %v1130, 0.0
        %v1444 = vadd.f32 %v1353, 0.0
        %v1445 = vadd.f32 %v1139, 0.0
        %v1446 = vadd.f32 %v1356, 0.0
        %v1447 = vadd.f32 %v1148, 0.0
        %v1448 = vadd.f32 %v1359, 0.0
        %v1449 = vadd.f32 %v1157, 0.0
        %v1450 = vadd.f32 %v1362, 0.0
        %v1451 = vadd.f32 %v1166, 0.0
        %v1452 = vadd.f32 %v1365, 0.0
        %v1453 = vadd.f32 %v1175, 0.0
        %v1454 = vadd.f32 %v1368, 0.0
        %v1455 = vadd.f32 %v1184, 0.0
        %v1456 = vadd.f32 %v1371, 0.0
        %v1457 = vadd.f32 %v1193, 0.0
        %v1458 = vadd.f32 %v1374, 0.0
        %v1459 = vadd.f32 %v1202, 0.0
        %v1460 = vadd.f32 %v1377, 0.0
        %v1461 = vadd.f32 %v1211, 0.0
        %vm1494 = vcmask 1046528
        %v1495 = vrot.slane %v1335, 1
        %v1496 = vrot.slane %v1083, 1
        %v1497 = vsel %vm1494, %v1495, %v1496
        %v1498 = vrot.slane %v1383, 1
        %v1499 = vsel %vm1494, %v1496, %v1498
        %v1500 = vrot.slane %v1336, 1
        %v1501 = vrot.slane %v1087, 1
        %v1502 = vsel %vm1494, %v1500, %v1501
        %v1503 = vrot.slane %v1384, 1
        %v1504 = vsel %vm1494, %v1501, %v1503
        %v1505 = vrot.slane %v1338, 1
        %v1506 = vrot.slane %v1094, 1
        %v1507 = vsel %vm1494, %v1505, %v1506
        %v1508 = vrot.slane %v1386, 1
        %v1509 = vsel %vm1494, %v1506, %v1508
        %v1510 = vrot.slane %v1341, 1
        %v1511 = vrot.slane %v1103, 1
        %v1512 = vsel %vm1494, %v1510, %v1511
        %v1513 = vrot.slane %v1389, 1
        %v1514 = vsel %vm1494, %v1511, %v1513
        %v1515 = vrot.slane %v1344, 1
        %v1516 = vrot.slane %v1112, 1
        %v1517 = vsel %vm1494, %v1515, %v1516
        %v1518 = vrot.slane %v1392, 1
        %v1519 = vsel %vm1494, %v1516, %v1518
        %v1520 = vrot.slane %v1347, 1
        %v1521 = vrot.slane %v1121, 1
        %v1522 = vsel %vm1494, %v1520, %v1521
        %v1523 = vrot.slane %v1395, 1
        %v1524 = vsel %vm1494, %v1521, %v1523
        %v1525 = vrot.slane %v1350, 1
        %v1526 = vrot.slane %v1130, 1
        %v1527 = vsel %vm1494, %v1525, %v1526
        %v1528 = vrot.slane %v1398, 1
        %v1529 = vsel %vm1494, %v1526, %v1528
        %v1530 = vrot.slane %v1353, 1
        %v1531 = vrot.slane %v1139, 1
        %v1532 = vsel %vm1494, %v1530, %v1531
        %v1533 = vrot.slane %v1401, 1
        %v1534 = vsel %vm1494, %v1531, %v1533
        %v1535 = vrot.slane %v1356, 1
        %v1536 = vrot.slane %v1148, 1
        %v1537 = vsel %vm1494, %v1535, %v1536
        %v1538 = vrot.slane %v1404, 1
        %v1539 = vsel %vm1494, %v1536, %v1538
        %v1540 = vrot.slane %v1359, 1
        %v1541 = vrot.slane %v1157, 1
        %v1542 = vsel %vm1494, %v1540, %v1541
        %v1543 = vrot.slane %v1407, 1
        %v1544 = vsel %vm1494, %v1541, %v1543
        %v1545 = vrot.slane %v1362, 1
        %v1546 = vrot.slane %v1166, 1
        %v1547 = vsel %vm1494, %v1545, %v1546
        %v1548 = vrot.slane %v1410, 1
        %v1549 = vsel %vm1494, %v1546, %v1548
        %v1550 = vrot.slane %v1365, 1
        %v1551 = vrot.slane %v1175, 1
        %v1552 = vsel %vm1494, %v1550, %v1551
        %v1553 = vrot.slane %v1413, 1
        %v1554 = vsel %vm1494, %v1551, %v1553
        %v1555 = vrot.slane %v1368, 1
        %v1556 = vrot.slane %v1184, 1
        %v1557 = vsel %vm1494, %v1555, %v1556
        %v1558 = vrot.slane %v1416, 1
        %v1559 = vsel %vm1494, %v1556, %v1558
        %v1560 = vrot.slane %v1371, 1
        %v1561 = vrot.slane %v1193, 1
        %v1562 = vsel %vm1494, %v1560, %v1561
        %v1563 = vrot.slane %v1419, 1
        %v1564 = vsel %vm1494, %v1561, %v1563
        %v1565 = vrot.slane %v1374, 1
        %v1566 = vrot.slane %v1202, 1
        %v1567 = vsel %vm1494, %v1565, %v1566
        %v1568 = vrot.slane %v1422, 1
        %v1569 = vsel %vm1494, %v1566, %v1568
        %v1570 = vrot.slane %v1377, 1
        %v1571 = vrot.slane %v1211, 1
        %v1572 = vsel %vm1494, %v1570, %v1571
        %v1573 = vrot.slane %v1425, 1
        %v1574 = vsel %vm1494, %v1571, %v1573
        %1575 = vrot.lane.b32.xlu0 %v1497, 96
        %v1576 = vpop.permute.xlu0 %1575
        %1577 = vrot.lane.b32.xlu0 %v1499, 96
        %v1578 = vpop.permute.xlu0 %1577
        %1579 = vrot.lane.b32.xlu0 %v1502, 96
        %v1580 = vpop.permute.xlu0 %1579
        %1581 = vrot.lane.b32.xlu0 %v1504, 96
        %v1582 = vpop.permute.xlu0 %1581
        %1583 = vrot.lane.b32.xlu0 %v1507, 96
        %v1584 = vpop.permute.xlu0 %1583
        %1585 = vrot.lane.b32.xlu0 %v1509, 96
        %v1586 = vpop.permute.xlu0 %1585
        %1587 = vrot.lane.b32.xlu0 %v1512, 96
        %v1588 = vpop.permute.xlu0 %1587
        %1589 = vrot.lane.b32.xlu0 %v1514, 96
        %v1590 = vpop.permute.xlu0 %1589
        %1591 = vrot.lane.b32.xlu0 %v1517, 96
        %v1592 = vpop.permute.xlu0 %1591
        %1593 = vrot.lane.b32.xlu0 %v1519, 96
        %v1594 = vpop.permute.xlu0 %1593
        %1595 = vrot.lane.b32.xlu0 %v1522, 96
        %v1596 = vpop.permute.xlu0 %1595
        %1597 = vrot.lane.b32.xlu0 %v1524, 96
        %v1598 = vpop.permute.xlu0 %1597
        %1599 = vrot.lane.b32.xlu0 %v1527, 96
        %v1600 = vpop.permute.xlu0 %1599
        %1601 = vrot.lane.b32.xlu0 %v1529, 96
        %v1602 = vpop.permute.xlu0 %1601
        %1603 = vrot.lane.b32.xlu0 %v1532, 96
        %v1604 = vpop.permute.xlu0 %1603
        %1605 = vrot.lane.b32.xlu0 %v1534, 96
        %v1606 = vpop.permute.xlu0 %1605
        %1607 = vrot.lane.b32.xlu0 %v1537, 96
        %v1608 = vpop.permute.xlu0 %1607
        %1609 = vrot.lane.b32.xlu0 %v1539, 96
        %v1610 = vpop.permute.xlu0 %1609
        %1611 = vrot.lane.b32.xlu0 %v1542, 96
        %v1612 = vpop.permute.xlu0 %1611
        %1613 = vrot.lane.b32.xlu0 %v1544, 96
        %v1614 = vpop.permute.xlu0 %1613
        %1615 = vrot.lane.b32.xlu0 %v1547, 96
        %v1616 = vpop.permute.xlu0 %1615
        %1617 = vrot.lane.b32.xlu0 %v1549, 96
        %v1618 = vpop.permute.xlu0 %1617
        %1619 = vrot.lane.b32.xlu0 %v1552, 96
        %v1620 = vpop.permute.xlu0 %1619
        %1621 = vrot.lane.b32.xlu0 %v1554, 96
        %v1622 = vpop.permute.xlu0 %1621
        %1623 = vrot.lane.b32.xlu0 %v1557, 96
        %v1624 = vpop.permute.xlu0 %1623
        %1625 = vrot.lane.b32.xlu0 %v1559, 96
        %v1626 = vpop.permute.xlu0 %1625
        %1627 = vrot.lane.b32.xlu0 %v1562, 96
        %v1628 = vpop.permute.xlu0 %1627
        %1629 = vrot.lane.b32.xlu0 %v1564, 96
        %v1630 = vpop.permute.xlu0 %1629
        %1631 = vrot.lane.b32.xlu0 %v1567, 96
        %v1632 = vpop.permute.xlu0 %1631
        %1633 = vrot.lane.b32.xlu0 %v1569, 96
        %v1634 = vpop.permute.xlu0 %1633
        %1635 = vrot.lane.b32.xlu0 %v1572, 96
        %v1636 = vpop.permute.xlu0 %1635
        %1637 = vrot.lane.b32.xlu0 %v1574, 96
        %v1638 = vpop.permute.xlu0 %1637
        %v1671 = vadd.f32 %v1430, %v1576
        %v1672 = vadd.f32 %v1431, %v1578
        %v1673 = vadd.f32 %v1432, %v1580
        %v1674 = vadd.f32 %v1433, %v1582
        %v1675 = vadd.f32 %v1434, %v1584
        %v1676 = vadd.f32 %v1435, %v1586
        %v1677 = vadd.f32 %v1436, %v1588
        %v1678 = vadd.f32 %v1437, %v1590
        %v1679 = vadd.f32 %v1438, %v1592
        %v1680 = vadd.f32 %v1439, %v1594
        %v1681 = vadd.f32 %v1440, %v1596
        %v1682 = vadd.f32 %v1441, %v1598
        %v1683 = vadd.f32 %v1442, %v1600
        %v1684 = vadd.f32 %v1443, %v1602
        %v1685 = vadd.f32 %v1444, %v1604
        %v1686 = vadd.f32 %v1445, %v1606
        %v1687 = vadd.f32 %v1446, %v1608
        %v1688 = vadd.f32 %v1447, %v1610
        %v1689 = vadd.f32 %v1448, %v1612
        %v1690 = vadd.f32 %v1449, %v1614
        %v1691 = vadd.f32 %v1450, %v1616
        %v1692 = vadd.f32 %v1451, %v1618
        %v1693 = vadd.f32 %v1452, %v1620
        %v1694 = vadd.f32 %v1453, %v1622
        %v1695 = vadd.f32 %v1454, %v1624
        %v1696 = vadd.f32 %v1455, %v1626
        %v1697 = vadd.f32 %v1456, %v1628
        %v1698 = vadd.f32 %v1457, %v1630
        %v1699 = vadd.f32 %v1458, %v1632
        %v1700 = vadd.f32 %v1459, %v1634
        %v1701 = vadd.f32 %v1460, %v1636
        %v1702 = vadd.f32 %v1461, %v1638
        %vm1703 = vcmask 1045504
        %v1704 = vrot.slane %v1335, 2
        %v1705 = vrot.slane %v1083, 2
        %v1706 = vsel %vm1703, %v1704, %v1705
        %v1707 = vrot.slane %v1383, 2
        %v1708 = vsel %vm1703, %v1705, %v1707
        %v1709 = vrot.slane %v1336, 2
        %v1710 = vrot.slane %v1087, 2
        %v1711 = vsel %vm1703, %v1709, %v1710
        %v1712 = vrot.slane %v1384, 2
        %v1713 = vsel %vm1703, %v1710, %v1712
        %v1714 = vrot.slane %v1338, 2
        %v1715 = vrot.slane %v1094, 2
        %v1716 = vsel %vm1703, %v1714, %v1715
        %v1717 = vrot.slane %v1386, 2
        %v1718 = vsel %vm1703, %v1715, %v1717
        %v1719 = vrot.slane %v1341, 2
        %v1720 = vrot.slane %v1103, 2
        %v1721 = vsel %vm1703, %v1719, %v1720
        %v1722 = vrot.slane %v1389, 2
        %v1723 = vsel %vm1703, %v1720, %v1722
        %v1724 = vrot.slane %v1344, 2
        %v1725 = vrot.slane %v1112, 2
        %v1726 = vsel %vm1703, %v1724, %v1725
        %v1727 = vrot.slane %v1392, 2
        %v1728 = vsel %vm1703, %v1725, %v1727
        %v1729 = vrot.slane %v1347, 2
        %v1730 = vrot.slane %v1121, 2
        %v1731 = vsel %vm1703, %v1729, %v1730
        %v1732 = vrot.slane %v1395, 2
        %v1733 = vsel %vm1703, %v1730, %v1732
        %v1734 = vrot.slane %v1350, 2
        %v1735 = vrot.slane %v1130, 2
        %v1736 = vsel %vm1703, %v1734, %v1735
        %v1737 = vrot.slane %v1398, 2
        %v1738 = vsel %vm1703, %v1735, %v1737
        %v1739 = vrot.slane %v1353, 2
        %v1740 = vrot.slane %v1139, 2
        %v1741 = vsel %vm1703, %v1739, %v1740
        %v1742 = vrot.slane %v1401, 2
        %v1743 = vsel %vm1703, %v1740, %v1742
        %v1744 = vrot.slane %v1356, 2
        %v1745 = vrot.slane %v1148, 2
        %v1746 = vsel %vm1703, %v1744, %v1745
        %v1747 = vrot.slane %v1404, 2
        %v1748 = vsel %vm1703, %v1745, %v1747
        %v1749 = vrot.slane %v1359, 2
        %v1750 = vrot.slane %v1157, 2
        %v1751 = vsel %vm1703, %v1749, %v1750
        %v1752 = vrot.slane %v1407, 2
        %v1753 = vsel %vm1703, %v1750, %v1752
        %v1754 = vrot.slane %v1362, 2
        %v1755 = vrot.slane %v1166, 2
        %v1756 = vsel %vm1703, %v1754, %v1755
        %v1757 = vrot.slane %v1410, 2
        %v1758 = vsel %vm1703, %v1755, %v1757
        %v1759 = vrot.slane %v1365, 2
        %v1760 = vrot.slane %v1175, 2
        %v1761 = vsel %vm1703, %v1759, %v1760
        %v1762 = vrot.slane %v1413, 2
        %v1763 = vsel %vm1703, %v1760, %v1762
        %v1764 = vrot.slane %v1368, 2
        %v1765 = vrot.slane %v1184, 2
        %v1766 = vsel %vm1703, %v1764, %v1765
        %v1767 = vrot.slane %v1416, 2
        %v1768 = vsel %vm1703, %v1765, %v1767
        %v1769 = vrot.slane %v1371, 2
        %v1770 = vrot.slane %v1193, 2
        %v1771 = vsel %vm1703, %v1769, %v1770
        %v1772 = vrot.slane %v1419, 2
        %v1773 = vsel %vm1703, %v1770, %v1772
        %v1774 = vrot.slane %v1374, 2
        %v1775 = vrot.slane %v1202, 2
        %v1776 = vsel %vm1703, %v1774, %v1775
        %v1777 = vrot.slane %v1422, 2
        %v1778 = vsel %vm1703, %v1775, %v1777
        %v1779 = vrot.slane %v1377, 2
        %v1780 = vrot.slane %v1211, 2
        %v1781 = vsel %vm1703, %v1779, %v1780
        %v1782 = vrot.slane %v1425, 2
        %v1783 = vsel %vm1703, %v1780, %v1782
        %1784 = vrot.lane.b32.xlu0 %v1706, 64
        %v1785 = vpop.permute.xlu0 %1784
        %1786 = vrot.lane.b32.xlu0 %v1708, 64
        %v1787 = vpop.permute.xlu0 %1786
        %1788 = vrot.lane.b32.xlu0 %v1711, 64
        %v1789 = vpop.permute.xlu0 %1788
        %1790 = vrot.lane.b32.xlu0 %v1713, 64
        %v1791 = vpop.permute.xlu0 %1790
        %1792 = vrot.lane.b32.xlu0 %v1716, 64
        %v1793 = vpop.permute.xlu0 %1792
        %1794 = vrot.lane.b32.xlu0 %v1718, 64
        %v1795 = vpop.permute.xlu0 %1794
        %1796 = vrot.lane.b32.xlu0 %v1721, 64
        %v1797 = vpop.permute.xlu0 %1796
        %1798 = vrot.lane.b32.xlu0 %v1723, 64
        %v1799 = vpop.permute.xlu0 %1798
        %1800 = vrot.lane.b32.xlu0 %v1726, 64
        %v1801 = vpop.permute.xlu0 %1800
        %1802 = vrot.lane.b32.xlu0 %v1728, 64
        %v1803 = vpop.permute.xlu0 %1802
        %1804 = vrot.lane.b32.xlu0 %v1731, 64
        %v1805 = vpop.permute.xlu0 %1804
        %1806 = vrot.lane.b32.xlu0 %v1733, 64
        %v1807 = vpop.permute.xlu0 %1806
        %1808 = vrot.lane.b32.xlu0 %v1736, 64
        %v1809 = vpop.permute.xlu0 %1808
        %1810 = vrot.lane.b32.xlu0 %v1738, 64
        %v1811 = vpop.permute.xlu0 %1810
        %1812 = vrot.lane.b32.xlu0 %v1741, 64
        %v1813 = vpop.permute.xlu0 %1812
        %1814 = vrot.lane.b32.xlu0 %v1743, 64
        %v1815 = vpop.permute.xlu0 %1814
        %1816 = vrot.lane.b32.xlu0 %v1746, 64
        %v1817 = vpop.permute.xlu0 %1816
        %1818 = vrot.lane.b32.xlu0 %v1748, 64
        %v1819 = vpop.permute.xlu0 %1818
        %1820 = vrot.lane.b32.xlu0 %v1751, 64
        %v1821 = vpop.permute.xlu0 %1820
        %1822 = vrot.lane.b32.xlu0 %v1753, 64
        %v1823 = vpop.permute.xlu0 %1822
        %1824 = vrot.lane.b32.xlu0 %v1756, 64
        %v1825 = vpop.permute.xlu0 %1824
        %1826 = vrot.lane.b32.xlu0 %v1758, 64
        %v1827 = vpop.permute.xlu0 %1826
        %1828 = vrot.lane.b32.xlu0 %v1761, 64
        %v1829 = vpop.permute.xlu0 %1828
        %1830 = vrot.lane.b32.xlu0 %v1763, 64
        %v1831 = vpop.permute.xlu0 %1830
        %1832 = vrot.lane.b32.xlu0 %v1766, 64
        %v1833 = vpop.permute.xlu0 %1832
        %1834 = vrot.lane.b32.xlu0 %v1768, 64
        %v1835 = vpop.permute.xlu0 %1834
        %1836 = vrot.lane.b32.xlu0 %v1771, 64
        %v1837 = vpop.permute.xlu0 %1836
        %1838 = vrot.lane.b32.xlu0 %v1773, 64
        %v1839 = vpop.permute.xlu0 %1838
        %1840 = vrot.lane.b32.xlu0 %v1776, 64
        %v1841 = vpop.permute.xlu0 %1840
        %1842 = vrot.lane.b32.xlu0 %v1778, 64
        %v1843 = vpop.permute.xlu0 %1842
        %1844 = vrot.lane.b32.xlu0 %v1781, 64
        %v1845 = vpop.permute.xlu0 %1844
        %1846 = vrot.lane.b32.xlu0 %v1783, 64
        %v1847 = vpop.permute.xlu0 %1846
        %v1880 = vadd.f32 %v1671, %v1785
        %v1881 = vadd.f32 %v1672, %v1787
        %v1882 = vadd.f32 %v1673, %v1789
        %v1883 = vadd.f32 %v1674, %v1791
        %v1884 = vadd.f32 %v1675, %v1793
        %v1885 = vadd.f32 %v1676, %v1795
        %v1886 = vadd.f32 %v1677, %v1797
        %v1887 = vadd.f32 %v1678, %v1799
        %v1888 = vadd.f32 %v1679, %v1801
        %v1889 = vadd.f32 %v1680, %v1803
        %v1890 = vadd.f32 %v1681, %v1805
        %v1891 = vadd.f32 %v1682, %v1807
        %v1892 = vadd.f32 %v1683, %v1809
        %v1893 = vadd.f32 %v1684, %v1811
        %v1894 = vadd.f32 %v1685, %v1813
        %v1895 = vadd.f32 %v1686, %v1815
        %v1896 = vadd.f32 %v1687, %v1817
        %v1897 = vadd.f32 %v1688, %v1819
        %v1898 = vadd.f32 %v1689, %v1821
        %v1899 = vadd.f32 %v1690, %v1823
        %v1900 = vadd.f32 %v1691, %v1825
        %v1901 = vadd.f32 %v1692, %v1827
        %v1902 = vadd.f32 %v1693, %v1829
        %v1903 = vadd.f32 %v1694, %v1831
        %v1904 = vadd.f32 %v1695, %v1833
        %v1905 = vadd.f32 %v1696, %v1835
        %v1906 = vadd.f32 %v1697, %v1837
        %v1907 = vadd.f32 %v1698, %v1839
        %v1908 = vadd.f32 %v1699, %v1841
        %v1909 = vadd.f32 %v1700, %v1843
        %v1910 = vadd.f32 %v1701, %v1845
        %v1911 = vadd.f32 %v1702, %v1847
        %1913 = vrot.lane.b32.xlu0 %v1336, 32
        %v1914 = vpop.permute.xlu0 %1913
        %1915 = vrot.lane.b32.xlu0 %v1087, 32
        %v1916 = vpop.permute.xlu0 %1915
        %1917 = vrot.lane.b32.xlu0 %v1338, 32
        %v1918 = vpop.permute.xlu0 %1917
        %1919 = vrot.lane.b32.xlu0 %v1094, 32
        %v1920 = vpop.permute.xlu0 %1919
        %1921 = vrot.lane.b32.xlu0 %v1341, 32
        %v1922 = vpop.permute.xlu0 %1921
        %1923 = vrot.lane.b32.xlu0 %v1103, 32
        %v1924 = vpop.permute.xlu0 %1923
        %1925 = vrot.lane.b32.xlu0 %v1344, 32
        %v1926 = vpop.permute.xlu0 %1925
        %1927 = vrot.lane.b32.xlu0 %v1112, 32
        %v1928 = vpop.permute.xlu0 %1927
        %1929 = vrot.lane.b32.xlu0 %v1347, 32
        %v1930 = vpop.permute.xlu0 %1929
        %1931 = vrot.lane.b32.xlu0 %v1121, 32
        %v1932 = vpop.permute.xlu0 %1931
        %1933 = vrot.lane.b32.xlu0 %v1350, 32
        %v1934 = vpop.permute.xlu0 %1933
        %1935 = vrot.lane.b32.xlu0 %v1130, 32
        %v1936 = vpop.permute.xlu0 %1935
        %1937 = vrot.lane.b32.xlu0 %v1353, 32
        %v1938 = vpop.permute.xlu0 %1937
        %1939 = vrot.lane.b32.xlu0 %v1139, 32
        %v1940 = vpop.permute.xlu0 %1939
        %1941 = vrot.lane.b32.xlu0 %v1356, 32
        %v1942 = vpop.permute.xlu0 %1941
        %1943 = vrot.lane.b32.xlu0 %v1148, 32
        %v1944 = vpop.permute.xlu0 %1943
        %1945 = vrot.lane.b32.xlu0 %v1359, 32
        %v1946 = vpop.permute.xlu0 %1945
        %1947 = vrot.lane.b32.xlu0 %v1157, 32
        %v1948 = vpop.permute.xlu0 %1947
        %1949 = vrot.lane.b32.xlu0 %v1362, 32
        %v1950 = vpop.permute.xlu0 %1949
        %1951 = vrot.lane.b32.xlu0 %v1166, 32
        %v1952 = vpop.permute.xlu0 %1951
        %1953 = vrot.lane.b32.xlu0 %v1365, 32
        %v1954 = vpop.permute.xlu0 %1953
        %1955 = vrot.lane.b32.xlu0 %v1175, 32
        %v1956 = vpop.permute.xlu0 %1955
        %1957 = vrot.lane.b32.xlu0 %v1368, 32
        %v1958 = vpop.permute.xlu0 %1957
        %1959 = vrot.lane.b32.xlu0 %v1184, 32
        %v1960 = vpop.permute.xlu0 %1959
        %1961 = vrot.lane.b32.xlu0 %v1371, 32
        %v1962 = vpop.permute.xlu0 %1961
        %1963 = vrot.lane.b32.xlu0 %v1193, 32
        %v1964 = vpop.permute.xlu0 %1963
        %1965 = vrot.lane.b32.xlu0 %v1374, 32
        %v1966 = vpop.permute.xlu0 %1965
        %1967 = vrot.lane.b32.xlu0 %v1202, 32
        %v1968 = vpop.permute.xlu0 %1967
        %1969 = vrot.lane.b32.xlu0 %v1377, 32
        %v1970 = vpop.permute.xlu0 %1969
        %1971 = vrot.lane.b32.xlu0 %v1211, 32
        %v1972 = vpop.permute.xlu0 %1971
        %1973 = vrot.lane.b32.xlu0 %v1380, 32
        %v1974 = vpop.permute.xlu0 %1973
        %1975 = vrot.lane.b32.xlu0 %v1220, 32
        %v1976 = vpop.permute.xlu0 %1975
        %v2009 = vadd.f32 %v1880, %v1914
        %v2010 = vadd.f32 %v1881, %v1916
        %v2011 = vadd.f32 %v1882, %v1918
        %v2012 = vadd.f32 %v1883, %v1920
        %v2013 = vadd.f32 %v1884, %v1922
        %v2014 = vadd.f32 %v1885, %v1924
        %v2015 = vadd.f32 %v1886, %v1926
        %v2016 = vadd.f32 %v1887, %v1928
        %v2017 = vadd.f32 %v1888, %v1930
        %v2018 = vadd.f32 %v1889, %v1932
        %v2019 = vadd.f32 %v1890, %v1934
        %v2020 = vadd.f32 %v1891, %v1936
        %v2021 = vadd.f32 %v1892, %v1938
        %v2022 = vadd.f32 %v1893, %v1940
        %v2023 = vadd.f32 %v1894, %v1942
        %v2024 = vadd.f32 %v1895, %v1944
        %v2025 = vadd.f32 %v1896, %v1946
        %v2026 = vadd.f32 %v1897, %v1948
        %v2027 = vadd.f32 %v1898, %v1950
        %v2028 = vadd.f32 %v1899, %v1952
        %v2029 = vadd.f32 %v1900, %v1954
        %v2030 = vadd.f32 %v1901, %v1956
        %v2031 = vadd.f32 %v1902, %v1958
        %v2032 = vadd.f32 %v1903, %v1960
        %v2033 = vadd.f32 %v1904, %v1962
        %v2034 = vadd.f32 %v1905, %v1964
        %v2035 = vadd.f32 %v1906, %v1966
        %v2036 = vadd.f32 %v1907, %v1968
        %v2037 = vadd.f32 %v1908, %v1970
        %v2038 = vadd.f32 %v1909, %v1972
        %v2039 = vadd.f32 %v1910, %v1974
        %v2040 = vadd.f32 %v1911, %v1976
        %v2073 = vrot.slane %v1337, 1
        %v2074 = vrot.slane %v1089, 1
        %v2075 = vsel %vm1494, %v2073, %v2074
        %v2076 = vrot.slane %v1385, 1
        %v2077 = vsel %vm1494, %v2074, %v2076
        %v2078 = vrot.slane %v1339, 1
        %v2079 = vrot.slane %v1096, 1
        %v2080 = vsel %vm1494, %v2078, %v2079
        %v2081 = vrot.slane %v1387, 1
        %v2082 = vsel %vm1494, %v2079, %v2081
        %v2083 = vrot.slane %v1342, 1
        %v2084 = vrot.slane %v1105, 1
        %v2085 = vsel %vm1494, %v2083, %v2084
        %v2086 = vrot.slane %v1390, 1
        %v2087 = vsel %vm1494, %v2084, %v2086
        %v2088 = vrot.slane %v1345, 1
        %v2089 = vrot.slane %v1114, 1
        %v2090 = vsel %vm1494, %v2088, %v2089
        %v2091 = vrot.slane %v1393, 1
        %v2092 = vsel %vm1494, %v2089, %v2091
        %v2093 = vrot.slane %v1348, 1
        %v2094 = vrot.slane %v1123, 1
        %v2095 = vsel %vm1494, %v2093, %v2094
        %v2096 = vrot.slane %v1396, 1
        %v2097 = vsel %vm1494, %v2094, %v2096
        %v2098 = vrot.slane %v1351, 1
        %v2099 = vrot.slane %v1132, 1
        %v2100 = vsel %vm1494, %v2098, %v2099
        %v2101 = vrot.slane %v1399, 1
        %v2102 = vsel %vm1494, %v2099, %v2101
        %v2103 = vrot.slane %v1354, 1
        %v2104 = vrot.slane %v1141, 1
        %v2105 = vsel %vm1494, %v2103, %v2104
        %v2106 = vrot.slane %v1402, 1
        %v2107 = vsel %vm1494, %v2104, %v2106
        %v2108 = vrot.slane %v1357, 1
        %v2109 = vrot.slane %v1150, 1
        %v2110 = vsel %vm1494, %v2108, %v2109
        %v2111 = vrot.slane %v1405, 1
        %v2112 = vsel %vm1494, %v2109, %v2111
        %v2113 = vrot.slane %v1360, 1
        %v2114 = vrot.slane %v1159, 1
        %v2115 = vsel %vm1494, %v2113, %v2114
        %v2116 = vrot.slane %v1408, 1
        %v2117 = vsel %vm1494, %v2114, %v2116
        %v2118 = vrot.slane %v1363, 1
        %v2119 = vrot.slane %v1168, 1
        %v2120 = vsel %vm1494, %v2118, %v2119
        %v2121 = vrot.slane %v1411, 1
        %v2122 = vsel %vm1494, %v2119, %v2121
        %v2123 = vrot.slane %v1366, 1
        %v2124 = vrot.slane %v1177, 1
        %v2125 = vsel %vm1494, %v2123, %v2124
        %v2126 = vrot.slane %v1414, 1
        %v2127 = vsel %vm1494, %v2124, %v2126
        %v2128 = vrot.slane %v1369, 1
        %v2129 = vrot.slane %v1186, 1
        %v2130 = vsel %vm1494, %v2128, %v2129
        %v2131 = vrot.slane %v1417, 1
        %v2132 = vsel %vm1494, %v2129, %v2131
        %v2133 = vrot.slane %v1372, 1
        %v2134 = vrot.slane %v1195, 1
        %v2135 = vsel %vm1494, %v2133, %v2134
        %v2136 = vrot.slane %v1420, 1
        %v2137 = vsel %vm1494, %v2134, %v2136
        %v2138 = vrot.slane %v1375, 1
        %v2139 = vrot.slane %v1204, 1
        %v2140 = vsel %vm1494, %v2138, %v2139
        %v2141 = vrot.slane %v1423, 1
        %v2142 = vsel %vm1494, %v2139, %v2141
        %v2143 = vrot.slane %v1378, 1
        %v2144 = vrot.slane %v1213, 1
        %v2145 = vsel %vm1494, %v2143, %v2144
        %v2146 = vrot.slane %v1426, 1
        %v2147 = vsel %vm1494, %v2144, %v2146
        %v2148 = vrot.slane %v1381, 1
        %v2149 = vrot.slane %v1222, 1
        %v2150 = vsel %vm1494, %v2148, %v2149
        %v2151 = vrot.slane %v1428, 1
        %v2152 = vsel %vm1494, %v2149, %v2151
        %v2185 = vadd.f32 %v2009, %v2075
        %v2186 = vadd.f32 %v2010, %v2077
        %v2187 = vadd.f32 %v2011, %v2080
        %v2188 = vadd.f32 %v2012, %v2082
        %v2189 = vadd.f32 %v2013, %v2085
        %v2190 = vadd.f32 %v2014, %v2087
        %v2191 = vadd.f32 %v2015, %v2090
        %v2192 = vadd.f32 %v2016, %v2092
        %v2193 = vadd.f32 %v2017, %v2095
        %v2194 = vadd.f32 %v2018, %v2097
        %v2195 = vadd.f32 %v2019, %v2100
        %v2196 = vadd.f32 %v2020, %v2102
        %v2197 = vadd.f32 %v2021, %v2105
        %v2198 = vadd.f32 %v2022, %v2107
        %v2199 = vadd.f32 %v2023, %v2110
        %v2200 = vadd.f32 %v2024, %v2112
        %v2201 = vadd.f32 %v2025, %v2115
        %v2202 = vadd.f32 %v2026, %v2117
        %v2203 = vadd.f32 %v2027, %v2120
        %v2204 = vadd.f32 %v2028, %v2122
        %v2205 = vadd.f32 %v2029, %v2125
        %v2206 = vadd.f32 %v2030, %v2127
        %v2207 = vadd.f32 %v2031, %v2130
        %v2208 = vadd.f32 %v2032, %v2132
        %v2209 = vadd.f32 %v2033, %v2135
        %v2210 = vadd.f32 %v2034, %v2137
        %v2211 = vadd.f32 %v2035, %v2140
        %v2212 = vadd.f32 %v2036, %v2142
        %v2213 = vadd.f32 %v2037, %v2145
        %v2214 = vadd.f32 %v2038, %v2147
        %v2215 = vadd.f32 %v2039, %v2150
        %v2216 = vadd.f32 %v2040, %v2152
        %v2217 = vrot.slane %v1337, 2
        %v2218 = vrot.slane %v1089, 2
        %v2219 = vsel %vm1703, %v2217, %v2218
        %v2220 = vrot.slane %v1385, 2
        %v2221 = vsel %vm1703, %v2218, %v2220
        %v2222 = vrot.slane %v1339, 2
        %v2223 = vrot.slane %v1096, 2
        %v2224 = vsel %vm1703, %v2222, %v2223
        %v2225 = vrot.slane %v1387, 2
        %v2226 = vsel %vm1703, %v2223, %v2225
        %v2227 = vrot.slane %v1342, 2
        %v2228 = vrot.slane %v1105, 2
        %v2229 = vsel %vm1703, %v2227, %v2228
        %v2230 = vrot.slane %v1390, 2
        %v2231 = vsel %vm1703, %v2228, %v2230
        %v2232 = vrot.slane %v1345, 2
        %v2233 = vrot.slane %v1114, 2
        %v2234 = vsel %vm1703, %v2232, %v2233
        %v2235 = vrot.slane %v1393, 2
        %v2236 = vsel %vm1703, %v2233, %v2235
        %v2237 = vrot.slane %v1348, 2
        %v2238 = vrot.slane %v1123, 2
        %v2239 = vsel %vm1703, %v2237, %v2238
        %v2240 = vrot.slane %v1396, 2
        %v2241 = vsel %vm1703, %v2238, %v2240
        %v2242 = vrot.slane %v1351, 2
        %v2243 = vrot.slane %v1132, 2
        %v2244 = vsel %vm1703, %v2242, %v2243
        %v2245 = vrot.slane %v1399, 2
        %v2246 = vsel %vm1703, %v2243, %v2245
        %v2247 = vrot.slane %v1354, 2
        %v2248 = vrot.slane %v1141, 2
        %v2249 = vsel %vm1703, %v2247, %v2248
        %v2250 = vrot.slane %v1402, 2
        %v2251 = vsel %vm1703, %v2248, %v2250
        %v2252 = vrot.slane %v1357, 2
        %v2253 = vrot.slane %v1150, 2
        %v2254 = vsel %vm1703, %v2252, %v2253
        %v2255 = vrot.slane %v1405, 2
        %v2256 = vsel %vm1703, %v2253, %v2255
        %v2257 = vrot.slane %v1360, 2
        %v2258 = vrot.slane %v1159, 2
        %v2259 = vsel %vm1703, %v2257, %v2258
        %v2260 = vrot.slane %v1408, 2
        %v2261 = vsel %vm1703, %v2258, %v2260
        %v2262 = vrot.slane %v1363, 2
        %v2263 = vrot.slane %v1168, 2
        %v2264 = vsel %vm1703, %v2262, %v2263
        %v2265 = vrot.slane %v1411, 2
        %v2266 = vsel %vm1703, %v2263, %v2265
        %v2267 = vrot.slane %v1366, 2
        %v2268 = vrot.slane %v1177, 2
        %v2269 = vsel %vm1703, %v2267, %v2268
        %v2270 = vrot.slane %v1414, 2
        %v2271 = vsel %vm1703, %v2268, %v2270
        %v2272 = vrot.slane %v1369, 2
        %v2273 = vrot.slane %v1186, 2
        %v2274 = vsel %vm1703, %v2272, %v2273
        %v2275 = vrot.slane %v1417, 2
        %v2276 = vsel %vm1703, %v2273, %v2275
        %v2277 = vrot.slane %v1372, 2
        %v2278 = vrot.slane %v1195, 2
        %v2279 = vsel %vm1703, %v2277, %v2278
        %v2280 = vrot.slane %v1420, 2
        %v2281 = vsel %vm1703, %v2278, %v2280
        %v2282 = vrot.slane %v1375, 2
        %v2283 = vrot.slane %v1204, 2
        %v2284 = vsel %vm1703, %v2282, %v2283
        %v2285 = vrot.slane %v1423, 2
        %v2286 = vsel %vm1703, %v2283, %v2285
        %v2287 = vrot.slane %v1378, 2
        %v2288 = vrot.slane %v1213, 2
        %v2289 = vsel %vm1703, %v2287, %v2288
        %v2290 = vrot.slane %v1426, 2
        %v2291 = vsel %vm1703, %v2288, %v2290
        %v2292 = vrot.slane %v1381, 2
        %v2293 = vrot.slane %v1222, 2
        %v2294 = vsel %vm1703, %v2292, %v2293
        %v2295 = vrot.slane %v1428, 2
        %v2296 = vsel %vm1703, %v2293, %v2295
        %2297 = vrot.lane.b32.xlu0 %v2219, 96
        %v2298 = vpop.permute.xlu0 %2297
        %2299 = vrot.lane.b32.xlu0 %v2221, 96
        %v2300 = vpop.permute.xlu0 %2299
        %2301 = vrot.lane.b32.xlu0 %v2224, 96
        %v2302 = vpop.permute.xlu0 %2301
        %2303 = vrot.lane.b32.xlu0 %v2226, 96
        %v2304 = vpop.permute.xlu0 %2303
        %2305 = vrot.lane.b32.xlu0 %v2229, 96
        %v2306 = vpop.permute.xlu0 %2305
        %2307 = vrot.lane.b32.xlu0 %v2231, 96
        %v2308 = vpop.permute.xlu0 %2307
        %2309 = vrot.lane.b32.xlu0 %v2234, 96
        %v2310 = vpop.permute.xlu0 %2309
        %2311 = vrot.lane.b32.xlu0 %v2236, 96
        %v2312 = vpop.permute.xlu0 %2311
        %2313 = vrot.lane.b32.xlu0 %v2239, 96
        %v2314 = vpop.permute.xlu0 %2313
        %2315 = vrot.lane.b32.xlu0 %v2241, 96
        %v2316 = vpop.permute.xlu0 %2315
        %2317 = vrot.lane.b32.xlu0 %v2244, 96
        %v2318 = vpop.permute.xlu0 %2317
        %2319 = vrot.lane.b32.xlu0 %v2246, 96
        %v2320 = vpop.permute.xlu0 %2319
        %2321 = vrot.lane.b32.xlu0 %v2249, 96
        %v2322 = vpop.permute.xlu0 %2321
        %2323 = vrot.lane.b32.xlu0 %v2251, 96
        %v2324 = vpop.permute.xlu0 %2323
        %2325 = vrot.lane.b32.xlu0 %v2254, 96
        %v2326 = vpop.permute.xlu0 %2325
        %2327 = vrot.lane.b32.xlu0 %v2256, 96
        %v2328 = vpop.permute.xlu0 %2327
        %2329 = vrot.lane.b32.xlu0 %v2259, 96
        %v2330 = vpop.permute.xlu0 %2329
        %2331 = vrot.lane.b32.xlu0 %v2261, 96
        %v2332 = vpop.permute.xlu0 %2331
        %2333 = vrot.lane.b32.xlu0 %v2264, 96
        %v2334 = vpop.permute.xlu0 %2333
        %2335 = vrot.lane.b32.xlu0 %v2266, 96
        %v2336 = vpop.permute.xlu0 %2335
        %2337 = vrot.lane.b32.xlu0 %v2269, 96
        %v2338 = vpop.permute.xlu0 %2337
        %2339 = vrot.lane.b32.xlu0 %v2271, 96
        %v2340 = vpop.permute.xlu0 %2339
        %2341 = vrot.lane.b32.xlu0 %v2274, 96
        %v2342 = vpop.permute.xlu0 %2341
        %2343 = vrot.lane.b32.xlu0 %v2276, 96
        %v2344 = vpop.permute.xlu0 %2343
        %2345 = vrot.lane.b32.xlu0 %v2279, 96
        %v2346 = vpop.permute.xlu0 %2345
        %2347 = vrot.lane.b32.xlu0 %v2281, 96
        %v2348 = vpop.permute.xlu0 %2347
        %2349 = vrot.lane.b32.xlu0 %v2284, 96
        %v2350 = vpop.permute.xlu0 %2349
        %2351 = vrot.lane.b32.xlu0 %v2286, 96
        %v2352 = vpop.permute.xlu0 %2351
        %2353 = vrot.lane.b32.xlu0 %v2289, 96
        %v2354 = vpop.permute.xlu0 %2353
        %2355 = vrot.lane.b32.xlu0 %v2291, 96
        %v2356 = vpop.permute.xlu0 %2355
        %2357 = vrot.lane.b32.xlu0 %v2294, 96
        %v2358 = vpop.permute.xlu0 %2357
        %2359 = vrot.lane.b32.xlu0 %v2296, 96
        %v2360 = vpop.permute.xlu0 %2359
        %v2393 = vadd.f32 %v2185, %v2298
        %v2394 = vadd.f32 %v2186, %v2300
        %v2395 = vadd.f32 %v2187, %v2302
        %v2396 = vadd.f32 %v2188, %v2304
        %v2397 = vadd.f32 %v2189, %v2306
        %v2398 = vadd.f32 %v2190, %v2308
        %v2399 = vadd.f32 %v2191, %v2310
        %v2400 = vadd.f32 %v2192, %v2312
        %v2401 = vadd.f32 %v2193, %v2314
        %v2402 = vadd.f32 %v2194, %v2316
        %v2403 = vadd.f32 %v2195, %v2318
        %v2404 = vadd.f32 %v2196, %v2320
        %v2405 = vadd.f32 %v2197, %v2322
        %v2406 = vadd.f32 %v2198, %v2324
        %v2407 = vadd.f32 %v2199, %v2326
        %v2408 = vadd.f32 %v2200, %v2328
        %v2409 = vadd.f32 %v2201, %v2330
        %v2410 = vadd.f32 %v2202, %v2332
        %v2411 = vadd.f32 %v2203, %v2334
        %v2412 = vadd.f32 %v2204, %v2336
        %v2413 = vadd.f32 %v2205, %v2338
        %v2414 = vadd.f32 %v2206, %v2340
        %v2415 = vadd.f32 %v2207, %v2342
        %v2416 = vadd.f32 %v2208, %v2344
        %v2417 = vadd.f32 %v2209, %v2346
        %v2418 = vadd.f32 %v2210, %v2348
        %v2419 = vadd.f32 %v2211, %v2350
        %v2420 = vadd.f32 %v2212, %v2352
        %v2421 = vadd.f32 %v2213, %v2354
        %v2422 = vadd.f32 %v2214, %v2356
        %v2423 = vadd.f32 %v2215, %v2358
        %v2424 = vadd.f32 %v2216, %v2360
        %2425 = vrot.lane.b32.xlu0 %v1339, 64
        %v2426 = vpop.permute.xlu0 %2425
        %2427 = vrot.lane.b32.xlu0 %v1096, 64
        %v2428 = vpop.permute.xlu0 %2427
        %2429 = vrot.lane.b32.xlu0 %v1342, 64
        %v2430 = vpop.permute.xlu0 %2429
        %2431 = vrot.lane.b32.xlu0 %v1105, 64
        %v2432 = vpop.permute.xlu0 %2431
        %2433 = vrot.lane.b32.xlu0 %v1345, 64
        %v2434 = vpop.permute.xlu0 %2433
        %2435 = vrot.lane.b32.xlu0 %v1114, 64
        %v2436 = vpop.permute.xlu0 %2435
        %2437 = vrot.lane.b32.xlu0 %v1348, 64
        %v2438 = vpop.permute.xlu0 %2437
        %2439 = vrot.lane.b32.xlu0 %v1123, 64
        %v2440 = vpop.permute.xlu0 %2439
        %2441 = vrot.lane.b32.xlu0 %v1351, 64
        %v2442 = vpop.permute.xlu0 %2441
        %2443 = vrot.lane.b32.xlu0 %v1132, 64
        %v2444 = vpop.permute.xlu0 %2443
        %2445 = vrot.lane.b32.xlu0 %v1354, 64
        %v2446 = vpop.permute.xlu0 %2445
        %2447 = vrot.lane.b32.xlu0 %v1141, 64
        %v2448 = vpop.permute.xlu0 %2447
        %2449 = vrot.lane.b32.xlu0 %v1357, 64
        %v2450 = vpop.permute.xlu0 %2449
        %2451 = vrot.lane.b32.xlu0 %v1150, 64
        %v2452 = vpop.permute.xlu0 %2451
        %2453 = vrot.lane.b32.xlu0 %v1360, 64
        %v2454 = vpop.permute.xlu0 %2453
        %2455 = vrot.lane.b32.xlu0 %v1159, 64
        %v2456 = vpop.permute.xlu0 %2455
        %2457 = vrot.lane.b32.xlu0 %v1363, 64
        %v2458 = vpop.permute.xlu0 %2457
        %2459 = vrot.lane.b32.xlu0 %v1168, 64
        %v2460 = vpop.permute.xlu0 %2459
        %2461 = vrot.lane.b32.xlu0 %v1366, 64
        %v2462 = vpop.permute.xlu0 %2461
        %2463 = vrot.lane.b32.xlu0 %v1177, 64
        %v2464 = vpop.permute.xlu0 %2463
        %2465 = vrot.lane.b32.xlu0 %v1369, 64
        %v2466 = vpop.permute.xlu0 %2465
        %2467 = vrot.lane.b32.xlu0 %v1186, 64
        %v2468 = vpop.permute.xlu0 %2467
        %2469 = vrot.lane.b32.xlu0 %v1372, 64
        %v2470 = vpop.permute.xlu0 %2469
        %2471 = vrot.lane.b32.xlu0 %v1195, 64
        %v2472 = vpop.permute.xlu0 %2471
        %2473 = vrot.lane.b32.xlu0 %v1375, 64
        %v2474 = vpop.permute.xlu0 %2473
        %2475 = vrot.lane.b32.xlu0 %v1204, 64
        %v2476 = vpop.permute.xlu0 %2475
        %2477 = vrot.lane.b32.xlu0 %v1378, 64
        %v2478 = vpop.permute.xlu0 %2477
        %2479 = vrot.lane.b32.xlu0 %v1213, 64
        %v2480 = vpop.permute.xlu0 %2479
        %2481 = vrot.lane.b32.xlu0 %v1381, 64
        %v2482 = vpop.permute.xlu0 %2481
        %2483 = vrot.lane.b32.xlu0 %v1222, 64
        %v2484 = vpop.permute.xlu0 %2483
        %2485 = vrot.lane.b32.xlu0 %v1335, 64
        %v2486 = vpop.permute.xlu0 %2485
        %2487 = vrot.lane.b32.xlu0 %v1083, 64
        %v2488 = vpop.permute.xlu0 %2487
        %v2521 = vadd.f32 %v2393, %v2426
        %v2522 = vadd.f32 %v2394, %v2428
        %v2523 = vadd.f32 %v2395, %v2430
        %v2524 = vadd.f32 %v2396, %v2432
        %v2525 = vadd.f32 %v2397, %v2434
        %v2526 = vadd.f32 %v2398, %v2436
        %v2527 = vadd.f32 %v2399, %v2438
        %v2528 = vadd.f32 %v2400, %v2440
        %v2529 = vadd.f32 %v2401, %v2442
        %v2530 = vadd.f32 %v2402, %v2444
        %v2531 = vadd.f32 %v2403, %v2446
        %v2532 = vadd.f32 %v2404, %v2448
        %v2533 = vadd.f32 %v2405, %v2450
        %v2534 = vadd.f32 %v2406, %v2452
        %v2535 = vadd.f32 %v2407, %v2454
        %v2536 = vadd.f32 %v2408, %v2456
        %v2537 = vadd.f32 %v2409, %v2458
        %v2538 = vadd.f32 %v2410, %v2460
        %v2539 = vadd.f32 %v2411, %v2462
        %v2540 = vadd.f32 %v2412, %v2464
        %v2541 = vadd.f32 %v2413, %v2466
        %v2542 = vadd.f32 %v2414, %v2468
        %v2543 = vadd.f32 %v2415, %v2470
        %v2544 = vadd.f32 %v2416, %v2472
        %v2545 = vadd.f32 %v2417, %v2474
        %v2546 = vadd.f32 %v2418, %v2476
        %v2547 = vadd.f32 %v2419, %v2478
        %v2548 = vadd.f32 %v2420, %v2480
        %v2549 = vadd.f32 %v2421, %v2482
        %v2550 = vadd.f32 %v2422, %v2484
        %v2551 = vadd.f32 %v2423, %v2486
        %v2552 = vadd.f32 %v2424, %v2488
        %2553 = vrot.lane.b32.xlu0 %v2080, 32
        %v2554 = vpop.permute.xlu0 %2553
        %2555 = vrot.lane.b32.xlu0 %v2082, 32
        %v2556 = vpop.permute.xlu0 %2555
        %2557 = vrot.lane.b32.xlu0 %v2085, 32
        %v2558 = vpop.permute.xlu0 %2557
        %2559 = vrot.lane.b32.xlu0 %v2087, 32
        %v2560 = vpop.permute.xlu0 %2559
        %2561 = vrot.lane.b32.xlu0 %v2090, 32
        %v2562 = vpop.permute.xlu0 %2561
        %2563 = vrot.lane.b32.xlu0 %v2092, 32
        %v2564 = vpop.permute.xlu0 %2563
        %2565 = vrot.lane.b32.xlu0 %v2095, 32
        %v2566 = vpop.permute.xlu0 %2565
        %2567 = vrot.lane.b32.xlu0 %v2097, 32
        %v2568 = vpop.permute.xlu0 %2567
        %2569 = vrot.lane.b32.xlu0 %v2100, 32
        %v2570 = vpop.permute.xlu0 %2569
        %2571 = vrot.lane.b32.xlu0 %v2102, 32
        %v2572 = vpop.permute.xlu0 %2571
        %2573 = vrot.lane.b32.xlu0 %v2105, 32
        %v2574 = vpop.permute.xlu0 %2573
        %2575 = vrot.lane.b32.xlu0 %v2107, 32
        %v2576 = vpop.permute.xlu0 %2575
        %2577 = vrot.lane.b32.xlu0 %v2110, 32
        %v2578 = vpop.permute.xlu0 %2577
        %2579 = vrot.lane.b32.xlu0 %v2112, 32
        %v2580 = vpop.permute.xlu0 %2579
        %2581 = vrot.lane.b32.xlu0 %v2115, 32
        %v2582 = vpop.permute.xlu0 %2581
        %2583 = vrot.lane.b32.xlu0 %v2117, 32
        %v2584 = vpop.permute.xlu0 %2583
        %2585 = vrot.lane.b32.xlu0 %v2120, 32
        %v2586 = vpop.permute.xlu0 %2585
        %2587 = vrot.lane.b32.xlu0 %v2122, 32
        %v2588 = vpop.permute.xlu0 %2587
        %2589 = vrot.lane.b32.xlu0 %v2125, 32
        %v2590 = vpop.permute.xlu0 %2589
        %2591 = vrot.lane.b32.xlu0 %v2127, 32
        %v2592 = vpop.permute.xlu0 %2591
        %2593 = vrot.lane.b32.xlu0 %v2130, 32
        %v2594 = vpop.permute.xlu0 %2593
        %2595 = vrot.lane.b32.xlu0 %v2132, 32
        %v2596 = vpop.permute.xlu0 %2595
        %2597 = vrot.lane.b32.xlu0 %v2135, 32
        %v2598 = vpop.permute.xlu0 %2597
        %2599 = vrot.lane.b32.xlu0 %v2137, 32
        %v2600 = vpop.permute.xlu0 %2599
        %2601 = vrot.lane.b32.xlu0 %v2140, 32
        %v2602 = vpop.permute.xlu0 %2601
        %2603 = vrot.lane.b32.xlu0 %v2142, 32
        %v2604 = vpop.permute.xlu0 %2603
        %2605 = vrot.lane.b32.xlu0 %v2145, 32
        %v2606 = vpop.permute.xlu0 %2605
        %2607 = vrot.lane.b32.xlu0 %v2147, 32
        %v2608 = vpop.permute.xlu0 %2607
        %2609 = vrot.lane.b32.xlu0 %v2150, 32
        %v2610 = vpop.permute.xlu0 %2609
        %2611 = vrot.lane.b32.xlu0 %v2152, 32
        %v2612 = vpop.permute.xlu0 %2611
        %2613 = vrot.lane.b32.xlu0 %v1497, 32
        %v2614 = vpop.permute.xlu0 %2613
        %2615 = vrot.lane.b32.xlu0 %v1499, 32
        %v2616 = vpop.permute.xlu0 %2615
        %v2649 = vadd.f32 %v2521, %v2554
        %v2650 = vadd.f32 %v2522, %v2556
        %v2651 = vadd.f32 %v2523, %v2558
        %v2652 = vadd.f32 %v2524, %v2560
        %v2653 = vadd.f32 %v2525, %v2562
        %v2654 = vadd.f32 %v2526, %v2564
        %v2655 = vadd.f32 %v2527, %v2566
        %v2656 = vadd.f32 %v2528, %v2568
        %v2657 = vadd.f32 %v2529, %v2570
        %v2658 = vadd.f32 %v2530, %v2572
        %v2659 = vadd.f32 %v2531, %v2574
        %v2660 = vadd.f32 %v2532, %v2576
        %v2661 = vadd.f32 %v2533, %v2578
        %v2662 = vadd.f32 %v2534, %v2580
        %v2663 = vadd.f32 %v2535, %v2582
        %v2664 = vadd.f32 %v2536, %v2584
        %v2665 = vadd.f32 %v2537, %v2586
        %v2666 = vadd.f32 %v2538, %v2588
        %v2667 = vadd.f32 %v2539, %v2590
        %v2668 = vadd.f32 %v2540, %v2592
        %v2669 = vadd.f32 %v2541, %v2594
        %v2670 = vadd.f32 %v2542, %v2596
        %v2671 = vadd.f32 %v2543, %v2598
        %v2672 = vadd.f32 %v2544, %v2600
        %v2673 = vadd.f32 %v2545, %v2602
        %v2674 = vadd.f32 %v2546, %v2604
        %v2675 = vadd.f32 %v2547, %v2606
        %v2676 = vadd.f32 %v2548, %v2608
        %v2677 = vadd.f32 %v2549, %v2610
        %v2678 = vadd.f32 %v2550, %v2612
        %v2679 = vadd.f32 %v2551, %v2614
        %v2680 = vadd.f32 %v2552, %v2616
        %v2711 = vrot.slane %v1340, 2
        %v2712 = vrot.slane %v1098, 2
        %v2713 = vsel %vm1703, %v2711, %v2712
        %v2714 = vrot.slane %v1388, 2
        %v2715 = vsel %vm1703, %v2712, %v2714
        %v2716 = vrot.slane %v1343, 2
        %v2717 = vrot.slane %v1107, 2
        %v2718 = vsel %vm1703, %v2716, %v2717
        %v2719 = vrot.slane %v1391, 2
        %v2720 = vsel %vm1703, %v2717, %v2719
        %v2721 = vrot.slane %v1346, 2
        %v2722 = vrot.slane %v1116, 2
        %v2723 = vsel %vm1703, %v2721, %v2722
        %v2724 = vrot.slane %v1394, 2
        %v2725 = vsel %vm1703, %v2722, %v2724
        %v2726 = vrot.slane %v1349, 2
        %v2727 = vrot.slane %v1125, 2
        %v2728 = vsel %vm1703, %v2726, %v2727
        %v2729 = vrot.slane %v1397, 2
        %v2730 = vsel %vm1703, %v2727, %v2729
        %v2731 = vrot.slane %v1352, 2
        %v2732 = vrot.slane %v1134, 2
        %v2733 = vsel %vm1703, %v2731, %v2732
        %v2734 = vrot.slane %v1400, 2
        %v2735 = vsel %vm1703, %v2732, %v2734
        %v2736 = vrot.slane %v1355, 2
        %v2737 = vrot.slane %v1143, 2
        %v2738 = vsel %vm1703, %v2736, %v2737
        %v2739 = vrot.slane %v1403, 2
        %v2740 = vsel %vm1703, %v2737, %v2739
        %v2741 = vrot.slane %v1358, 2
        %v2742 = vrot.slane %v1152, 2
        %v2743 = vsel %vm1703, %v2741, %v2742
        %v2744 = vrot.slane %v1406, 2
        %v2745 = vsel %vm1703, %v2742, %v2744
        %v2746 = vrot.slane %v1361, 2
        %v2747 = vrot.slane %v1161, 2
        %v2748 = vsel %vm1703, %v2746, %v2747
        %v2749 = vrot.slane %v1409, 2
        %v2750 = vsel %vm1703, %v2747, %v2749
        %v2751 = vrot.slane %v1364, 2
        %v2752 = vrot.slane %v1170, 2
        %v2753 = vsel %vm1703, %v2751, %v2752
        %v2754 = vrot.slane %v1412, 2
        %v2755 = vsel %vm1703, %v2752, %v2754
        %v2756 = vrot.slane %v1367, 2
        %v2757 = vrot.slane %v1179, 2
        %v2758 = vsel %vm1703, %v2756, %v2757
        %v2759 = vrot.slane %v1415, 2
        %v2760 = vsel %vm1703, %v2757, %v2759
        %v2761 = vrot.slane %v1370, 2
        %v2762 = vrot.slane %v1188, 2
        %v2763 = vsel %vm1703, %v2761, %v2762
        %v2764 = vrot.slane %v1418, 2
        %v2765 = vsel %vm1703, %v2762, %v2764
        %v2766 = vrot.slane %v1373, 2
        %v2767 = vrot.slane %v1197, 2
        %v2768 = vsel %vm1703, %v2766, %v2767
        %v2769 = vrot.slane %v1421, 2
        %v2770 = vsel %vm1703, %v2767, %v2769
        %v2771 = vrot.slane %v1376, 2
        %v2772 = vrot.slane %v1206, 2
        %v2773 = vsel %vm1703, %v2771, %v2772
        %v2774 = vrot.slane %v1424, 2
        %v2775 = vsel %vm1703, %v2772, %v2774
        %v2776 = vrot.slane %v1379, 2
        %v2777 = vrot.slane %v1215, 2
        %v2778 = vsel %vm1703, %v2776, %v2777
        %v2779 = vrot.slane %v1427, 2
        %v2780 = vsel %vm1703, %v2777, %v2779
        %v2781 = vrot.slane %v1382, 2
        %v2782 = vrot.slane %v1224, 2
        %v2783 = vsel %vm1703, %v2781, %v2782
        %v2784 = vrot.slane %v1429, 2
        %v2785 = vsel %vm1703, %v2782, %v2784
        %v2818 = vadd.f32 %v2649, %v2713
        %v2819 = vadd.f32 %v2650, %v2715
        %v2820 = vadd.f32 %v2651, %v2718
        %v2821 = vadd.f32 %v2652, %v2720
        %v2822 = vadd.f32 %v2653, %v2723
        %v2823 = vadd.f32 %v2654, %v2725
        %v2824 = vadd.f32 %v2655, %v2728
        %v2825 = vadd.f32 %v2656, %v2730
        %v2826 = vadd.f32 %v2657, %v2733
        %v2827 = vadd.f32 %v2658, %v2735
        %v2828 = vadd.f32 %v2659, %v2738
        %v2829 = vadd.f32 %v2660, %v2740
        %v2830 = vadd.f32 %v2661, %v2743
        %v2831 = vadd.f32 %v2662, %v2745
        %v2832 = vadd.f32 %v2663, %v2748
        %v2833 = vadd.f32 %v2664, %v2750
        %v2834 = vadd.f32 %v2665, %v2753
        %v2835 = vadd.f32 %v2666, %v2755
        %v2836 = vadd.f32 %v2667, %v2758
        %v2837 = vadd.f32 %v2668, %v2760
        %v2838 = vadd.f32 %v2669, %v2763
        %v2839 = vadd.f32 %v2670, %v2765
        %v2840 = vadd.f32 %v2671, %v2768
        %v2841 = vadd.f32 %v2672, %v2770
        %v2842 = vadd.f32 %v2673, %v2773
        %v2843 = vadd.f32 %v2674, %v2775
        %v2844 = vadd.f32 %v2675, %v2778
        %v2845 = vadd.f32 %v2676, %v2780
        %v2846 = vadd.f32 %v2677, %v2783
        %v2847 = vadd.f32 %v2678, %v2785
        %v2848 = vadd.f32 %v2679, %v1706
        %v2849 = vadd.f32 %v2680, %v1708
        // Predicated region
        $region37: #{dense_block_forward.1} parent=31 // pred_check
          %p2850 = pneg %p219
        $region38: #{dense_block_forward.1} parent=31 // pred_check_branch
          %2852 = sbr.rel (%p2850) target = $region40
        $region39: #{dense_block_forward.1} parent=31 // pred_region
          %2885 = vrot.lane.b32.xlu0 %v2818, 32
          %v2886 = vpop.permute.xlu0 %2885
          %2887 = vrot.lane.b32.xlu0 %v2819, 32
          %v2888 = vpop.permute.xlu0 %2887
          %2889 = vrot.lane.b32.xlu0 %v2820, 32
          %v2890 = vpop.permute.xlu0 %2889
          %2891 = vrot.lane.b32.xlu0 %v2821, 32
          %v2892 = vpop.permute.xlu0 %2891
          %2893 = vrot.lane.b32.xlu0 %v2822, 32
          %v2894 = vpop.permute.xlu0 %2893
          %2895 = vrot.lane.b32.xlu0 %v2823, 32
          %v2896 = vpop.permute.xlu0 %2895
          %2897 = vrot.lane.b32.xlu0 %v2824, 32
          %v2898 = vpop.permute.xlu0 %2897
          %2899 = vrot.lane.b32.xlu0 %v2825, 32
          %v2900 = vpop.permute.xlu0 %2899
          %2901 = vrot.lane.b32.xlu0 %v2826, 32
          %v2902 = vpop.permute.xlu0 %2901
          %2903 = vrot.lane.b32.xlu0 %v2827, 32
          %v2904 = vpop.permute.xlu0 %2903
          %2905 = vrot.lane.b32.xlu0 %v2828, 32
          %v2906 = vpop.permute.xlu0 %2905
          %2907 = vrot.lane.b32.xlu0 %v2829, 32
          %v2908 = vpop.permute.xlu0 %2907
          %2909 = vrot.lane.b32.xlu0 %v2830, 32
          %v2910 = vpop.permute.xlu0 %2909
          %2911 = vrot.lane.b32.xlu0 %v2831, 32
          %v2912 = vpop.permute.xlu0 %2911
          %2913 = vrot.lane.b32.xlu0 %v2832, 32
          %v2914 = vpop.permute.xlu0 %2913
          %2915 = vrot.lane.b32.xlu0 %v2833, 32
          %v2916 = vpop.permute.xlu0 %2915
          %2917 = vrot.lane.b32.xlu0 %v2834, 32
          %v2918 = vpop.permute.xlu0 %2917
          %2919 = vrot.lane.b32.xlu0 %v2835, 32
          %v2920 = vpop.permute.xlu0 %2919
          %2921 = vrot.lane.b32.xlu0 %v2836, 32
          %v2922 = vpop.permute.xlu0 %2921
          %2923 = vrot.lane.b32.xlu0 %v2837, 32
          %v2924 = vpop.permute.xlu0 %2923
          %2925 = vrot.lane.b32.xlu0 %v2838, 32
          %v2926 = vpop.permute.xlu0 %2925
          %2927 = vrot.lane.b32.xlu0 %v2839, 32
          %v2928 = vpop.permute.xlu0 %2927
          %2929 = vrot.lane.b32.xlu0 %v2840, 32
          %v2930 = vpop.permute.xlu0 %2929
          %2931 = vrot.lane.b32.xlu0 %v2841, 32
          %v2932 = vpop.permute.xlu0 %2931
          %2933 = vrot.lane.b32.xlu0 %v2842, 32
          %v2934 = vpop.permute.xlu0 %2933
          %2935 = vrot.lane.b32.xlu0 %v2843, 32
          %v2936 = vpop.permute.xlu0 %2935
          %2937 = vrot.lane.b32.xlu0 %v2844, 32
          %v2938 = vpop.permute.xlu0 %2937
          %2939 = vrot.lane.b32.xlu0 %v2845, 32
          %v2940 = vpop.permute.xlu0 %2939
          %2941 = vrot.lane.b32.xlu0 %v2846, 32
          %v2942 = vpop.permute.xlu0 %2941
          %2943 = vrot.lane.b32.xlu0 %v2847, 32
          %v2944 = vpop.permute.xlu0 %2943
          %2945 = vrot.lane.b32.xlu0 %v2848, 32
          %v2946 = vpop.permute.xlu0 %2945
          %2947 = vrot.lane.b32.xlu0 %v2849, 32
          %v2948 = vpop.permute.xlu0 %2947
          %vm2981 = vcmask 523520
          %2982 = vst.msk [vmem:[%s203] sm:$0xff] %vm2981, %v2886
          %2983 = vst.msk [vmem:[%s203 + $0x8] sm:$0xff] %vm2981, %v2888
          %2984 = vst.msk [vmem:[%s203 + $0x10] sm:$0xff] %vm2981, %v2890
          %2985 = vst.msk [vmem:[%s203 + $0x18] sm:$0xff] %vm2981, %v2892
          %2986 = vst.msk [vmem:[%s203 + $0x20] sm:$0xff] %vm2981, %v2894
          %2987 = vst.msk [vmem:[%s203 + $0x28] sm:$0xff] %vm2981, %v2896
          %2988 = vst.msk [vmem:[%s203 + $0x30] sm:$0xff] %vm2981, %v2898
          %2989 = vst.msk [vmem:[%s203 + $0x38] sm:$0xff] %vm2981, %v2900
          %2990 = vst.msk [vmem:[%s203 + $0x40] sm:$0xff] %vm2981, %v2902
          %2991 = vst.msk [vmem:[%s203 + $0x48] sm:$0xff] %vm2981, %v2904
          %2992 = vst.msk [vmem:[%s203 + $0x50] sm:$0xff] %vm2981, %v2906
          %2993 = vst.msk [vmem:[%s203 + $0x58] sm:$0xff] %vm2981, %v2908
          %2994 = vst.msk [vmem:[%s203 + $0x60] sm:$0xff] %vm2981, %v2910
          %2995 = vst.msk [vmem:[%s203 + $0x68] sm:$0xff] %vm2981, %v2912
          %2996 = vst.msk [vmem:[%s203 + $0x70] sm:$0xff] %vm2981, %v2914
          %2997 = vst.msk [vmem:[%s203 + $0x78] sm:$0xff] %vm2981, %v2916
          %2998 = vst.msk [vmem:[%s203 + $0x80] sm:$0xff] %vm2981, %v2918
          %2999 = vst.msk [vmem:[%s203 + $0x88] sm:$0xff] %vm2981, %v2920
          %3000 = vst.msk [vmem:[%s203 + $0x90] sm:$0xff] %vm2981, %v2922
          %3001 = vst.msk [vmem:[%s203 + $0x98] sm:$0xff] %vm2981, %v2924
          %3002 = vst.msk [vmem:[%s203 + $0xa0] sm:$0xff] %vm2981, %v2926
          %3003 = vst.msk [vmem:[%s203 + $0xa8] sm:$0xff] %vm2981, %v2928
          %3004 = vst.msk [vmem:[%s203 + $0xb0] sm:$0xff] %vm2981, %v2930
          %3005 = vst.msk [vmem:[%s203 + $0xb8] sm:$0xff] %vm2981, %v2932
          %3006 = vst.msk [vmem:[%s203 + $0xc0] sm:$0xff] %vm2981, %v2934
          %3007 = vst.msk [vmem:[%s203 + $0xc8] sm:$0xff] %vm2981, %v2936
          %3008 = vst.msk [vmem:[%s203 + $0xd0] sm:$0xff] %vm2981, %v2938
          %3009 = vst.msk [vmem:[%s203 + $0xd8] sm:$0xff] %vm2981, %v2940
          %3010 = vst.msk [vmem:[%s203 + $0xe0] sm:$0xff] %vm2981, %v2942
          %3011 = vst.msk [vmem:[%s203 + $0xe8] sm:$0xff] %vm2981, %v2944
          %3012 = vst.msk [vmem:[%s203 + $0xf0] sm:$0xff] %vm2981, %v2946
          %3013 = vst.msk [vmem:[%s203 + $0xf8] sm:$0xff] %vm2981, %v2948
        $region40: #{dense_block_forward.1} parent=31 // pred_fallthru
          _
        %p3014 = scmp.eq.s32.totalorder %s22, 1
        // Predicated region
        $region41: #{dense_block_forward.1} parent=31 // pred_check
          %p3015 = pneg %p3014
        $region42: #{dense_block_forward.1} parent=31 // pred_check_branch
          %3017 = sbr.rel (%p3015) target = $region44
        $region43: #{dense_block_forward.1} parent=31 // pred_region
          %3050 = vrot.lane.b32.xlu0 %v2818, 64
          %v3051 = vpop.permute.xlu0 %3050
          %3052 = vrot.lane.b32.xlu0 %v2819, 64
          %v3053 = vpop.permute.xlu0 %3052
          %3054 = vrot.lane.b32.xlu0 %v2820, 64
          %v3055 = vpop.permute.xlu0 %3054
          %3056 = vrot.lane.b32.xlu0 %v2821, 64
          %v3057 = vpop.permute.xlu0 %3056
          %3058 = vrot.lane.b32.xlu0 %v2822, 64
          %v3059 = vpop.permute.xlu0 %3058
          %3060 = vrot.lane.b32.xlu0 %v2823, 64
          %v3061 = vpop.permute.xlu0 %3060
          %3062 = vrot.lane.b32.xlu0 %v2824, 64
          %v3063 = vpop.permute.xlu0 %3062
          %3064 = vrot.lane.b32.xlu0 %v2825, 64
          %v3065 = vpop.permute.xlu0 %3064
          %3066 = vrot.lane.b32.xlu0 %v2826, 64
          %v3067 = vpop.permute.xlu0 %3066
          %3068 = vrot.lane.b32.xlu0 %v2827, 64
          %v3069 = vpop.permute.xlu0 %3068
          %3070 = vrot.lane.b32.xlu0 %v2828, 64
          %v3071 = vpop.permute.xlu0 %3070
          %3072 = vrot.lane.b32.xlu0 %v2829, 64
          %v3073 = vpop.permute.xlu0 %3072
          %3074 = vrot.lane.b32.xlu0 %v2830, 64
          %v3075 = vpop.permute.xlu0 %3074
          %3076 = vrot.lane.b32.xlu0 %v2831, 64
          %v3077 = vpop.permute.xlu0 %3076
          %3078 = vrot.lane.b32.xlu0 %v2832, 64
          %v3079 = vpop.permute.xlu0 %3078
          %3080 = vrot.lane.b32.xlu0 %v2833, 64
          %v3081 = vpop.permute.xlu0 %3080
          %3082 = vrot.lane.b32.xlu0 %v2834, 64
          %v3083 = vpop.permute.xlu0 %3082
          %3084 = vrot.lane.b32.xlu0 %v2835, 64
          %v3085 = vpop.permute.xlu0 %3084
          %3086 = vrot.lane.b32.xlu0 %v2836, 64
          %v3087 = vpop.permute.xlu0 %3086
          %3088 = vrot.lane.b32.xlu0 %v2837, 64
          %v3089 = vpop.permute.xlu0 %3088
          %3090 = vrot.lane.b32.xlu0 %v2838, 64
          %v3091 = vpop.permute.xlu0 %3090
          %3092 = vrot.lane.b32.xlu0 %v2839, 64
          %v3093 = vpop.permute.xlu0 %3092
          %3094 = vrot.lane.b32.xlu0 %v2840, 64
          %v3095 = vpop.permute.xlu0 %3094
          %3096 = vrot.lane.b32.xlu0 %v2841, 64
          %v3097 = vpop.permute.xlu0 %3096
          %3098 = vrot.lane.b32.xlu0 %v2842, 64
          %v3099 = vpop.permute.xlu0 %3098
          %3100 = vrot.lane.b32.xlu0 %v2843, 64
          %v3101 = vpop.permute.xlu0 %3100
          %3102 = vrot.lane.b32.xlu0 %v2844, 64
          %v3103 = vpop.permute.xlu0 %3102
          %3104 = vrot.lane.b32.xlu0 %v2845, 64
          %v3105 = vpop.permute.xlu0 %3104
          %3106 = vrot.lane.b32.xlu0 %v2846, 64
          %v3107 = vpop.permute.xlu0 %3106
          %3108 = vrot.lane.b32.xlu0 %v2847, 64
          %v3109 = vpop.permute.xlu0 %3108
          %3110 = vrot.lane.b32.xlu0 %v2848, 64
          %v3111 = vpop.permute.xlu0 %3110
          %3112 = vrot.lane.b32.xlu0 %v2849, 64
          %v3113 = vpop.permute.xlu0 %3112
          %vm3146 = vcmask 785920
          %3147 = vst.msk [vmem:[%s203] sm:$0xff] %vm3146, %v3051
          %3148 = vst.msk [vmem:[%s203 + $0x8] sm:$0xff] %vm3146, %v3053
          %3149 = vst.msk [vmem:[%s203 + $0x10] sm:$0xff] %vm3146, %v3055
          %3150 = vst.msk [vmem:[%s203 + $0x18] sm:$0xff] %vm3146, %v3057
          %3151 = vst.msk [vmem:[%s203 + $0x20] sm:$0xff] %vm3146, %v3059
          %3152 = vst.msk [vmem:[%s203 + $0x28] sm:$0xff] %vm3146, %v3061
          %3153 = vst.msk [vmem:[%s203 + $0x30] sm:$0xff] %vm3146, %v3063
          %3154 = vst.msk [vmem:[%s203 + $0x38] sm:$0xff] %vm3146, %v3065
          %3155 = vst.msk [vmem:[%s203 + $0x40] sm:$0xff] %vm3146, %v3067
          %3156 = vst.msk [vmem:[%s203 + $0x48] sm:$0xff] %vm3146, %v3069
          %3157 = vst.msk [vmem:[%s203 + $0x50] sm:$0xff] %vm3146, %v3071
          %3158 = vst.msk [vmem:[%s203 + $0x58] sm:$0xff] %vm3146, %v3073
          %3159 = vst.msk [vmem:[%s203 + $0x60] sm:$0xff] %vm3146, %v3075
          %3160 = vst.msk [vmem:[%s203 + $0x68] sm:$0xff] %vm3146, %v3077
          %3161 = vst.msk [vmem:[%s203 + $0x70] sm:$0xff] %vm3146, %v3079
          %3162 = vst.msk [vmem:[%s203 + $0x78] sm:$0xff] %vm3146, %v3081
          %3163 = vst.msk [vmem:[%s203 + $0x80] sm:$0xff] %vm3146, %v3083
          %3164 = vst.msk [vmem:[%s203 + $0x88] sm:$0xff] %vm3146, %v3085
          %3165 = vst.msk [vmem:[%s203 + $0x90] sm:$0xff] %vm3146, %v3087
          %3166 = vst.msk [vmem:[%s203 + $0x98] sm:$0xff] %vm3146, %v3089
          %3167 = vst.msk [vmem:[%s203 + $0xa0] sm:$0xff] %vm3146, %v3091
          %3168 = vst.msk [vmem:[%s203 + $0xa8] sm:$0xff] %vm3146, %v3093
          %3169 = vst.msk [vmem:[%s203 + $0xb0] sm:$0xff] %vm3146, %v3095
          %3170 = vst.msk [vmem:[%s203 + $0xb8] sm:$0xff] %vm3146, %v3097
          %3171 = vst.msk [vmem:[%s203 + $0xc0] sm:$0xff] %vm3146, %v3099
          %3172 = vst.msk [vmem:[%s203 + $0xc8] sm:$0xff] %vm3146, %v3101
          %3173 = vst.msk [vmem:[%s203 + $0xd0] sm:$0xff] %vm3146, %v3103
          %3174 = vst.msk [vmem:[%s203 + $0xd8] sm:$0xff] %vm3146, %v3105
          %3175 = vst.msk [vmem:[%s203 + $0xe0] sm:$0xff] %vm3146, %v3107
          %3176 = vst.msk [vmem:[%s203 + $0xe8] sm:$0xff] %vm3146, %v3109
          %3177 = vst.msk [vmem:[%s203 + $0xf0] sm:$0xff] %vm3146, %v3111
          %3178 = vst.msk [vmem:[%s203 + $0xf8] sm:$0xff] %vm3146, %v3113
        $region44: #{dense_block_forward.1} parent=31 // pred_fallthru
          _
        %p3179 = scmp.eq.s32.totalorder %s22, 2
        // Predicated region
        $region45: #{dense_block_forward.1} parent=31 // pred_check
          %p3180 = pneg %p3179
        $region46: #{dense_block_forward.1} parent=31 // pred_check_branch
          %3182 = sbr.rel (%p3180) target = $region48
        $region47: #{dense_block_forward.1} parent=31 // pred_region
          %3215 = vrot.lane.b32.xlu0 %v2818, 96
          %v3216 = vpop.permute.xlu0 %3215
          %3217 = vrot.lane.b32.xlu0 %v2819, 96
          %v3218 = vpop.permute.xlu0 %3217
          %3219 = vrot.lane.b32.xlu0 %v2820, 96
          %v3220 = vpop.permute.xlu0 %3219
          %3221 = vrot.lane.b32.xlu0 %v2821, 96
          %v3222 = vpop.permute.xlu0 %3221
          %3223 = vrot.lane.b32.xlu0 %v2822, 96
          %v3224 = vpop.permute.xlu0 %3223
          %3225 = vrot.lane.b32.xlu0 %v2823, 96
          %v3226 = vpop.permute.xlu0 %3225
          %3227 = vrot.lane.b32.xlu0 %v2824, 96
          %v3228 = vpop.permute.xlu0 %3227
          %3229 = vrot.lane.b32.xlu0 %v2825, 96
          %v3230 = vpop.permute.xlu0 %3229
          %3231 = vrot.lane.b32.xlu0 %v2826, 96
          %v3232 = vpop.permute.xlu0 %3231
          %3233 = vrot.lane.b32.xlu0 %v2827, 96
          %v3234 = vpop.permute.xlu0 %3233
          %3235 = vrot.lane.b32.xlu0 %v2828, 96
          %v3236 = vpop.permute.xlu0 %3235
          %3237 = vrot.lane.b32.xlu0 %v2829, 96
          %v3238 = vpop.permute.xlu0 %3237
          %3239 = vrot.lane.b32.xlu0 %v2830, 96
          %v3240 = vpop.permute.xlu0 %3239
          %3241 = vrot.lane.b32.xlu0 %v2831, 96
          %v3242 = vpop.permute.xlu0 %3241
          %3243 = vrot.lane.b32.xlu0 %v2832, 96
          %v3244 = vpop.permute.xlu0 %3243
          %3245 = vrot.lane.b32.xlu0 %v2833, 96
          %v3246 = vpop.permute.xlu0 %3245
          %3247 = vrot.lane.b32.xlu0 %v2834, 96
          %v3248 = vpop.permute.xlu0 %3247
          %3249 = vrot.lane.b32.xlu0 %v2835, 96
          %v3250 = vpop.permute.xlu0 %3249
          %3251 = vrot.lane.b32.xlu0 %v2836, 96
          %v3252 = vpop.permute.xlu0 %3251
          %3253 = vrot.lane.b32.xlu0 %v2837, 96
          %v3254 = vpop.permute.xlu0 %3253
          %3255 = vrot.lane.b32.xlu0 %v2838, 96
          %v3256 = vpop.permute.xlu0 %3255
          %3257 = vrot.lane.b32.xlu0 %v2839, 96
          %v3258 = vpop.permute.xlu0 %3257
          %3259 = vrot.lane.b32.xlu0 %v2840, 96
          %v3260 = vpop.permute.xlu0 %3259
          %3261 = vrot.lane.b32.xlu0 %v2841, 96
          %v3262 = vpop.permute.xlu0 %3261
          %3263 = vrot.lane.b32.xlu0 %v2842, 96
          %v3264 = vpop.permute.xlu0 %3263
          %3265 = vrot.lane.b32.xlu0 %v2843, 96
          %v3266 = vpop.permute.xlu0 %3265
          %3267 = vrot.lane.b32.xlu0 %v2844, 96
          %v3268 = vpop.permute.xlu0 %3267
          %3269 = vrot.lane.b32.xlu0 %v2845, 96
          %v3270 = vpop.permute.xlu0 %3269
          %3271 = vrot.lane.b32.xlu0 %v2846, 96
          %v3272 = vpop.permute.xlu0 %3271
          %3273 = vrot.lane.b32.xlu0 %v2847, 96
          %v3274 = vpop.permute.xlu0 %3273
          %3275 = vrot.lane.b32.xlu0 %v2848, 96
          %v3276 = vpop.permute.xlu0 %3275
          %3277 = vrot.lane.b32.xlu0 %v2849, 96
          %v3278 = vpop.permute.xlu0 %3277
          %vm3311 = vcmask 1048320
          %3312 = vst.msk [vmem:[%s203] sm:$0xff] %vm3311, %v3216
          %3313 = vst.msk [vmem:[%s203 + $0x8] sm:$0xff] %vm3311, %v3218
          %3314 = vst.msk [vmem:[%s203 + $0x10] sm:$0xff] %vm3311, %v3220
          %3315 = vst.msk [vmem:[%s203 + $0x18] sm:$0xff] %vm3311, %v3222
          %3316 = vst.msk [vmem:[%s203 + $0x20] sm:$0xff] %vm3311, %v3224
          %3317 = vst.msk [vmem:[%s203 + $0x28] sm:$0xff] %vm3311, %v3226
          %3318 = vst.msk [vmem:[%s203 + $0x30] sm:$0xff] %vm3311, %v3228
          %3319 = vst.msk [vmem:[%s203 + $0x38] sm:$0xff] %vm3311, %v3230
          %3320 = vst.msk [vmem:[%s203 + $0x40] sm:$0xff] %vm3311, %v3232
          %3321 = vst.msk [vmem:[%s203 + $0x48] sm:$0xff] %vm3311, %v3234
          %3322 = vst.msk [vmem:[%s203 + $0x50] sm:$0xff] %vm3311, %v3236
          %3323 = vst.msk [vmem:[%s203 + $0x58] sm:$0xff] %vm3311, %v3238
          %3324 = vst.msk [vmem:[%s203 + $0x60] sm:$0xff] %vm3311, %v3240
          %3325 = vst.msk [vmem:[%s203 + $0x68] sm:$0xff] %vm3311, %v3242
          %3326 = vst.msk [vmem:[%s203 + $0x70] sm:$0xff] %vm3311, %v3244
          %3327 = vst.msk [vmem:[%s203 + $0x78] sm:$0xff] %vm3311, %v3246
          %3328 = vst.msk [vmem:[%s203 + $0x80] sm:$0xff] %vm3311, %v3248
          %3329 = vst.msk [vmem:[%s203 + $0x88] sm:$0xff] %vm3311, %v3250
          %3330 = vst.msk [vmem:[%s203 + $0x90] sm:$0xff] %vm3311, %v3252
          %3331 = vst.msk [vmem:[%s203 + $0x98] sm:$0xff] %vm3311, %v3254
          %3332 = vst.msk [vmem:[%s203 + $0xa0] sm:$0xff] %vm3311, %v3256
          %3333 = vst.msk [vmem:[%s203 + $0xa8] sm:$0xff] %vm3311, %v3258
          %3334 = vst.msk [vmem:[%s203 + $0xb0] sm:$0xff] %vm3311, %v3260
          %3335 = vst.msk [vmem:[%s203 + $0xb8] sm:$0xff] %vm3311, %v3262
          %3336 = vst.msk [vmem:[%s203 + $0xc0] sm:$0xff] %vm3311, %v3264
          %3337 = vst.msk [vmem:[%s203 + $0xc8] sm:$0xff] %vm3311, %v3266
          %3338 = vst.msk [vmem:[%s203 + $0xd0] sm:$0xff] %vm3311, %v3268
          %3339 = vst.msk [vmem:[%s203 + $0xd8] sm:$0xff] %vm3311, %v3270
          %3340 = vst.msk [vmem:[%s203 + $0xe0] sm:$0xff] %vm3311, %v3272
          %3341 = vst.msk [vmem:[%s203 + $0xe8] sm:$0xff] %vm3311, %v3274
          %3342 = vst.msk [vmem:[%s203 + $0xf0] sm:$0xff] %vm3311, %v3276
          %3343 = vst.msk [vmem:[%s203 + $0xf8] sm:$0xff] %vm3311, %v3278
        $region48: #{dense_block_forward.1} parent=31 // pred_fallthru
          _
        %s3344 = sand.u32 %s115, 1
        %s3345 = scalar_lea.sflag [#allocation3], %s3344
        %s3346 = sand.u32 %s115, 1
        %s3347 = smul.addr %s3346, 256
        %s3348 = scalar_lea.vmem [#allocation2], %s3347
        // Predicated region
        $region49: #{dense_block_forward.1} parent=31 // pred_check
          %p3349 = pneg %p125
        $region50: #{dense_block_forward.1} parent=31 // pred_check_branch
          %3351 = sbr.rel (%p3349) target = $region52
        $region51: #{dense_block_forward.1} parent=31 // pred_region
          %s3353 = ssub.s32 4096, 4096
          %3354 = vsyncadd %s3345, %s3353
          %s3355 = smul.addr %s21, 32
          %s3356 = smul.addr %s3355, 128
          %s3357 = scalar_lea.hbm %s3, %s3356
          %s3358 = sshll.u32 %s3348, 4
          %s3359 = int_to_ptr.vmem [resolvable:$true] %s3358
          %3364 = dma.vmem_to_hbm [thread:$0]  %s3359, 4096, %s3357, %s3345, 128, 128, 8
        $region52: #{dense_block_forward.1} parent=31 // pred_fallthru
          _
      $region32: #{dense_block_forward.1} parent=5 // pred_fallthru
        _
      %p3365 = scmp.le.s32.totalorder 2, %s12
      // Predicated region
      $region53: #{dense_block_forward.1} parent=5 // pred_check
        %p3366 = pneg %p3365
      $region54: #{dense_block_forward.1} parent=5 // pred_check_branch
        %3368 = sbr.rel (%p3366) target = $region56
      $region55: #{dense_block_forward.1} parent=5 // pred_region
        %s3369 = ssub.s32 %s12, 2
        // Predicated region
        $region57: #{dense_block_forward.1} parent=55 // pred_check
          %p3370 = pneg %p131
        $region58: #{dense_block_forward.1} parent=55 // pred_check_branch
          %3372 = sbr.rel (%p3370) target = $region60
        $region59: #{dense_block_forward.1} parent=55 // pred_region
          %s3373 = sand.u32 %s116, 1
          %s3374 = scalar_lea.sflag [#allocation3], %s3373
          %s3375 = sand.u32 %s116, 1
          %s3376 = smul.addr %s3375, 256
          %s3377 = scalar_lea.vmem [#allocation2], %s3376
          %3378 = dma.done %s3374, 4096
        $region60: #{dense_block_forward.1} parent=55 // pred_fallthru
          _
      $region56: #{dense_block_forward.1} parent=5 // pred_fallthru
        _
    $region6: #{dense_block_forward.1} parent=1 // loop_footer
      %s16 = sadd.s32 1, %s12
    $region7: #{dense_block_forward.1} parent=1 // loop_footer_branch
      %11 = sbr.rel target = $region3
    $region8: #{dense_block_forward.1} parent=1 // loop_exit
      _
    %3379 = vsyncpa [#allocation3], 1
    %s3380 = scalar_lea.sflag [#allocation3], 1
    %3381 = vsyncpa %s3380, 1

</llo_original>
